<compile_context>
chip_gen: v7x
topology: tpu7x:2x2x1
jax: 0.10.0
libtpu: 0.0.40
codegen_flags: <defaults>
</compile_context>

<pallas_src>
import functools

import jax
import jax.numpy as jnp
from jax.experimental import pallas as pl
from jax.experimental.pallas import tpu as pltpu


def _round_up(x, m):
    return (x + m - 1) // m * m


# -----------------------------------------------------------------------------
# Kernel
# -----------------------------------------------------------------------------
def tds_block_kernel(xm_ref, xh_ref, wsh_ref, vec_ref, w1t_ref, w2t_ref,
                     out_ref, *, C, K, pad, eps):
    """One (batch, time-tile) grid step.

    xm_ref : [tT, D]        main time tile of the zero-padded input (f32)
    xh_ref : [hr, D]        look-ahead halo (first hr rows of the next tile of
                            the same padded array)
    wsh_ref: [(2C-1)*K, D]  grouped-conv taps as per-lane weight vectors,
                            row = (delta + C - 1) * K + k          (f32)
    vec_ref: [8, D]         rows: conv_b, pw1_b, pw2_b, g1, b1, g2, b2, 0
    w1t_ref: [D, D]         pointwise conv1 weight, transposed (d_in, d_out)
    w2t_ref: [D, D]         pointwise conv2 weight, transposed
    out_ref: [tT, D]
    """
    f32 = jnp.float32
    tT, D = out_ref.shape

    # Conv window = main tile + halo (contiguous rows of the padded input).
    xw = jnp.concatenate([xm_ref[...], xh_ref[...]], axis=0).astype(f32)
    res = xw[pad:pad + tT, :]                       # original input rows

    # ---- grouped conv1d over time (groups of C contiguous channels) --------
    # out[r, d] = sum_{k, delta} w[d, (d % C) + delta, k] * xw[r + k, d + delta]
    # evaluated as per-lane FMAs on lane-rotated windows (VPU/XLU, no MXU,
    # no F x dense zero blocks).  Lanes whose rotation wraps across a group
    # boundary always carry a zero weight.
    acc = jnp.zeros((tT, D), f32)
    for di, delta in enumerate(range(-(C - 1), C)):
        if delta == 0:
            x_rot = xw
        else:
            # x_rot[:, d] == xw[:, (d + delta) % D]
            x_rot = pltpu.roll(xw, (-delta) % D, 1)
        for k in range(K):
            w = wsh_ref[di * K + k, :][None, :]
            acc = acc + w * x_rot[k:k + tT, :]

    # relu(conv + bias) + residual.
    # TODO(synk): training-mode dropout (stateful RNG masks) is not
    # implemented; the forward uses inference semantics (dropout == identity).
    h = jnp.maximum(acc + vec_ref[0, :][None, :], 0.0) + res

    # ---- LayerNorm2D #1 over D = C*F, single pass (f32) ---------------------
    mean = jnp.sum(h, axis=-1, keepdims=True) * (1.0 / D)
    ex2 = jnp.sum(h * h, axis=-1, keepdims=True) * (1.0 / D)
    var = jnp.maximum(ex2 - mean * mean, 0.0)
    hn = (h - mean) * jax.lax.rsqrt(var + eps)
    hn = hn * vec_ref[3, :][None, :] + vec_ref[4, :][None, :]

    # ---- pointwise (1x1) convs: D x D matmuls on the MXU, bf16 operands -----
    mxu_dtype = w1t_ref.dtype
    y = jnp.dot(hn.astype(mxu_dtype), w1t_ref[...], preferred_element_type=f32)
    y = jnp.maximum(y + vec_ref[1, :][None, :], 0.0)
    y = jnp.dot(y.astype(mxu_dtype), w2t_ref[...], preferred_element_type=f32)
    y = y + vec_ref[2, :][None, :] + hn             # bias + residual (f32)

    # ---- LayerNorm2D #2, single pass (f32) ----------------------------------
    mean = jnp.sum(y, axis=-1, keepdims=True) * (1.0 / D)
    ex2 = jnp.sum(y * y, axis=-1, keepdims=True) * (1.0 / D)
    var = jnp.maximum(ex2 - mean * mean, 0.0)
    y = (y - mean) * jax.lax.rsqrt(var + eps)
    y = y * vec_ref[5, :][None, :] + vec_ref[6, :][None, :]

    out_ref[...] = y.astype(out_ref.dtype)


# -----------------------------------------------------------------------------
# Wrapper
# -----------------------------------------------------------------------------
def tds_block_pallas(xs, xlens, packed_params, *, kernel_size, eps=1e-12,
                     time_tile=256):
    """xs: [B, C, T, F] -> ([B, C, T, F], xlens)."""
    B, C, T, F = xs.shape
    D = C * F
    K = kernel_size
    assert K % 2 == 1, "TDS conv uses 'same' padding -> kernel_size must be odd"
    pad = (K - 1) // 2

    w_shift, vecs, w1t, w2t = packed_params

    # Conv halo rounded to a sublane multiple; time tile is a multiple of it.
    hr = _round_up(max(2 * pad, 1), 8)
    tT = max(_round_up(min(time_tile, _round_up(T, 8)), hr), hr)
    T_round = _round_up(T, tT)
    nT = T_round // tT
    Lp = T_round + tT              # >= T + 2*pad; multiple of tT and of hr

    # [B, C, T, F] -> [B, T, D] with d = c*F + f (matches the PyTorch
    # `xs.transpose(3, 2).view(B, C*F, T)` channel order), zero-padded in time:
    # `pad` rows on the left ('same' padding) and up to Lp on the right
    # ('same' padding + tile remainder + halo).
    # NOTE: in a full TDS encoder stack the [B, T, D] layout should be carried
    # between blocks so this transpose/pad round trip is paid once, not per
    # block.
    x_btd = jnp.transpose(xs, (0, 2, 1, 3)).reshape(B, T, D)
    xpad = jnp.pad(x_btd, ((0, 0), (pad, Lp - T - pad), (0, 0)))

    kernel = functools.partial(tds_block_kernel, C=C, K=K, pad=pad, eps=eps)

    itemsize = jnp.dtype(xs.dtype).itemsize
    flops = B * T_round * (4 * D * D + 2 * D * K * (2 * C - 1) + 16 * D)
    bytes_accessed = (xpad.size * itemsize + B * T_round * D * itemsize
                      + 2 * D * D * jnp.dtype(w1t.dtype).itemsize
                      + (w_shift.size + vecs.size) * 4)

    out = pl.pallas_call(
        kernel,
        out_shape=jax.ShapeDtypeStruct((B, T_round, D), xs.dtype),
        grid_spec=pltpu.PrefetchScalarGridSpec(
            num_scalar_prefetch=0,
            grid=(B, nT),
            in_specs=[
                # main [tT, D] time tile of the padded input
                pl.BlockSpec((None, tT, D), lambda b, t: (b, t, 0)),
                # look-ahead halo: first hr rows of the *next* time tile
                # (second blocked view of the same padded array)
                pl.BlockSpec((None, hr, D),
                             lambda b, t: (b, (t + 1) * (tT // hr), 0)),
                # constant weights: fetched once (constant index maps).  On
                # v7x these could also use pipeline_mode=pl.Buffered(1).
                pl.BlockSpec((w_shift.shape[0], D), lambda b, t: (0, 0)),
                pl.BlockSpec((8, D), lambda b, t: (0, 0)),
                pl.BlockSpec((D, D), lambda b, t: (0, 0)),
                pl.BlockSpec((D, D), lambda b, t: (0, 0)),
            ],
            out_specs=pl.BlockSpec((None, tT, D), lambda b, t: (b, t, 0)),
        ),
        compiler_params=pltpu.CompilerParams(
            # tiles are fully independent -> both axes can be split across
            # TensorCores (v7x megacore); harmless on v5e/v6e.
            dimension_semantics=("parallel", "parallel"),
            vmem_limit_bytes=48 * 1024 * 1024,
        ),
        cost_estimate=pl.CostEstimate(
            flops=int(flops),
            transcendentals=int(2 * B * T_round),
            bytes_accessed=int(bytes_accessed)),
    )(xpad, xpad, w_shift, vecs, w1t, w2t)

    # [B, T_round, D] -> [B, C, T, F]
    out = out[:, :T, :].reshape(B, T, C, F).transpose(0, 2, 1, 3)
    return out, xlens


# -----------------------------------------------------------------------------
# Parameters (PyTorch-module shapes) and packing
# -----------------------------------------------------------------------------
def init_params(key, C, F, K, dtype=jnp.float32):
    """Deterministic synthetic parameters with PyTorch-module shapes."""
    D = C * F
    ks = jax.random.split(key, 10)
    scale = 0.1
    w_conv = jax.random.normal(ks[0], (D, C, K), dtype) * scale   # grouped conv
    b_conv = jax.random.normal(ks[1], (D,), dtype) * scale
    g1 = 1.0 + jax.random.normal(ks[2], (C, F), dtype) * scale    # LayerNorm2D #1
    be1 = jax.random.normal(ks[3], (C, F), dtype) * scale
    w1 = jax.random.normal(ks[4], (D, D, 1), dtype) * scale       # pointwise conv1
    b1 = jax.random.normal(ks[5], (D,), dtype) * scale
    w2 = jax.random.normal(ks[6], (D, D, 1), dtype) * scale       # pointwise conv2
    b2 = jax.random.normal(ks[7], (D,), dtype) * scale
    g2 = 1.0 + jax.random.normal(ks[8], (C, F), dtype) * scale    # LayerNorm2D #2
    be2 = jax.random.normal(ks[9], (C, F), dtype) * scale
    return (w_conv, b_conv, g1, be1, w1, b1, w2, b2, g2, be2)


def pack_params(raw, C, F, K, mxu_dtype=jnp.bfloat16):
    """Convert PyTorch-shaped params to the kernel's packed layout."""
    w_conv, b_conv, g1, be1, w1, b1, w2, b2, g2, be2 = raw
    D = C * F
    f32 = jnp.float32

    # Grouped conv weight (PyTorch shape [D, C, K]; nn.Conv1d groups the
    # flattened channel axis d = c*F + f into F contiguous groups of C).
    # Repack as per-lane weight vectors indexed by the lane offset
    # delta = (source - dest) within a group; out-of-group entries are zero.
    wc = w_conv.astype(f32)
    d_idx = jnp.arange(D)
    i_idx = d_idx % C                       # within-group output index
    rows = []
    for delta in range(-(C - 1), C):
        j = i_idx + delta                   # within-group input index
        valid = ((j >= 0) & (j < C)).astype(f32)
        taps = wc[d_idx, jnp.clip(j, 0, C - 1), :] * valid[:, None]   # [D, K]
        for k in range(K):
            rows.append(taps[:, k])
    w_shift = jnp.stack(rows, axis=0)       # [(2C-1)*K, D]

    vecs = jnp.stack([b_conv.astype(f32), b1.astype(f32), b2.astype(f32),
                      g1.reshape(-1).astype(f32), be1.reshape(-1).astype(f32),
                      g2.reshape(-1).astype(f32), be2.reshape(-1).astype(f32),
                      jnp.zeros((D,), f32)], axis=0)                  # [8, D]

    w1t = w1[:, :, 0].T.astype(mxu_dtype)   # (d_in, d_out) bf16 MXU operand
    w2t = w2[:, :, 0].T.astype(mxu_dtype)
    return (w_shift, vecs, w1t, w2t)


# -----------------------------------------------------------------------------
# Pure-JAX reference mirroring the PyTorch forward (dropout = identity)
# -----------------------------------------------------------------------------
def tds_block_ref(xs, raw, kernel_size, eps=1e-12, matmul_dtype=None):
    w_conv, b_conv, g1, be1, w1, b1, w2, b2, g2, be2 = raw
    B, C, T, F = xs.shape
    D = C * F
    pad = (kernel_size - 1) // 2
    hi = jax.lax.Precision.HIGHEST

    x = jnp.transpose(xs, (0, 1, 3, 2)).reshape(B, D, T)          # [B, C*F, T]
    y = jax.lax.conv_general_dilated(
        x, w_conv, window_strides=(1,), padding=[(pad, pad)],
        dimension_numbers=('NCH', 'OIH', 'NCH'), feature_group_count=F,
        precision=hi)
    y = jnp.maximum(y + b_conv[None, :, None], 0.0)
    y = y.reshape(B, C, F, T).transpose(0, 1, 3, 2) + xs          # [B,C,T,F]

    yt = y.transpose(0, 2, 1, 3)                                  # [B,T,C,F]
    mean = yt.mean(axis=(2, 3), keepdims=True)
    var = ((yt - mean) ** 2).mean(axis=(2, 3), keepdims=True)
    yt = (yt - mean) / jnp.sqrt(var + eps) * g1[None, None] + be1[None, None]
    y = yt.transpose(0, 2, 1, 3)

    residual = y
    z = y.transpose(0, 1, 3, 2).reshape(B, D, T)
    w1m, w2m = w1[:, :, 0], w2[:, :, 0]
    if matmul_dtype is not None:
        z, w1m, w2m = (z.astype(matmul_dtype), w1m.astype(matmul_dtype),
                       w2m.astype(matmul_dtype))
    z = jnp.einsum('oi,bit->bot', w1m, z, precision=hi,
                   preferred_element_type=jnp.float32) + b1[None, :, None]
    z = jnp.maximum(z, 0.0)
    if matmul_dtype is not None:
        z = z.astype(matmul_dtype)
    z = jnp.einsum('oi,bit->bot', w2m, z, precision=hi,
                   preferred_element_type=jnp.float32) + b2[None, :, None]
    z = z.reshape(B, C, F, T).transpose(0, 1, 3, 2) + residual

    zt = z.transpose(0, 2, 1, 3)
    mean = zt.mean(axis=(2, 3), keepdims=True)
    var = ((zt - mean) ** 2).mean(axis=(2, 3), keepdims=True)
    zt = (zt - mean) / jnp.sqrt(var + eps) * g2[None, None] + be2[None, None]
    return zt.transpose(0, 2, 1, 3)


if __name__ == "__main__":
    # Small but TPU-friendly: D = C*F = 128 (lane-dense), 2 time tiles of 32.
    B, C, T, F = 2, 8, 64, 16
    K = 3
    eps = 1e-12

    key = jax.random.PRNGKey(0)
    kx, kp = jax.random.split(key)
    xs = jax.random.normal(kx, (B, C, T, F), jnp.float32)
    xlens = jnp.full((B,), T, jnp.int32)

    raw = init_params(kp, C, F, K)
    packed = pack_params(raw, C, F, K, mxu_dtype=jnp.bfloat16)

    out, out_lens = tds_block_pallas(xs, xlens, packed, kernel_size=K, eps=eps,
                                     time_tile=32)
    out = jax.block_until_ready(out)

    assert out.shape == (B, C, T, F)
    assert jnp.array_equal(out_lens, xlens)

    # Tight check vs. a reference that uses the same bf16 MXU operands.
    ref_bf16 = tds_block_ref(xs, raw, K, eps, matmul_dtype=jnp.bfloat16)
    assert jnp.allclose(out, ref_bf16, atol=1e-2, rtol=1e-2), \
        "mismatch vs bf16-matmul reference"

    # Loose check vs. the exact f32 PyTorch-semantics reference (difference is
    # only the bf16 MXU operands).
    ref_f32 = tds_block_ref(xs, raw, K, eps, matmul_dtype=None)
    assert jnp.allclose(out, ref_f32, atol=5e-2, rtol=5e-2), \
        "mismatch vs f32 reference"

    print("KERNEL_OK")
</pallas_src>

<mosaic_0001>
module attributes {stable_mosaic.version = 11 : i64} {
  func.func @tds_block_kernel(%arg0: i32, %arg1: i32, %arg2: memref<1x32x128xf32, #tpu.memory_space<vmem>>, %arg3: memref<1x8x128xf32, #tpu.memory_space<vmem>>, %arg4: memref<45x128xf32, #tpu.memory_space<vmem>>, %arg5: memref<8x128xf32, #tpu.memory_space<vmem>>, %arg6: memref<128x128xbf16, #tpu.memory_space<vmem>>, %arg7: memref<128x128xbf16, #tpu.memory_space<vmem>>, %arg8: memref<1x32x128xf32, #tpu.memory_space<vmem>>) attributes {dimension_semantics = [#tpu.dimension_semantics<parallel>, #tpu.dimension_semantics<parallel>], iteration_bounds = array<i64: 2, 2>, scalar_prefetch = 0 : i64, scratch_operands = 0 : i64, tpu.core_type = #tpu.core_type<tc>, window_params = [{transform_indices = @transform_0, window_bounds = array<i64: 1, 32, 128>}, {transform_indices = @transform_1, window_bounds = array<i64: 1, 8, 128>}, {pipeline_mode = #tpu.pipeline_mode<synchronous>, transform_indices = @transform_2, window_bounds = array<i64: 45, 128>}, {pipeline_mode = #tpu.pipeline_mode<synchronous>, transform_indices = @transform_3, window_bounds = array<i64: 8, 128>}, {pipeline_mode = #tpu.pipeline_mode<synchronous>, transform_indices = @transform_4, window_bounds = array<i64: 128, 128>}, {pipeline_mode = #tpu.pipeline_mode<synchronous>, transform_indices = @transform_5, window_bounds = array<i64: 128, 128>}, {transform_indices = @transform_6, window_bounds = array<i64: 1, 32, 128>}]} {
    %c0 = arith.constant 0 : index
    %c0_0 = arith.constant 0 : index
    %c0_1 = arith.constant 0 : index
    %0 = vector.load %arg2[%c0, %c0_0, %c0_1] : memref<1x32x128xf32, #tpu.memory_space<vmem>>, vector<1x32x128xf32>
    %1 = vector.shape_cast %0 : vector<1x32x128xf32> to vector<32x128xf32>
    %c0_2 = arith.constant 0 : index
    %c0_3 = arith.constant 0 : index
    %c0_4 = arith.constant 0 : index
    %2 = vector.load %arg3[%c0_2, %c0_3, %c0_4] : memref<1x8x128xf32, #tpu.memory_space<vmem>>, vector<1x8x128xf32>
    %3 = vector.shape_cast %2 : vector<1x8x128xf32> to vector<8x128xf32>
    %4 = tpu.concatenate %1, %3 in 0 : vector<32x128xf32>, vector<8x128xf32> -> vector<40x128xf32>
    %5 = vector.extract_strided_slice %4 {offsets = [1, 0], sizes = [32, 128], strides = [1, 1]} : vector<40x128xf32> to vector<32x128xf32>
    %cst = arith.constant 0.000000e+00 : f32
    %6 = vector.broadcast %cst : f32 to vector<32x128xf32>
    %c7_i32 = arith.constant 7 : i32
    %7 = tpu.dynamic_rotate %4 by %c7_i32 dim 1 : vector<40x128xf32>, i32 -> vector<40x128xf32>
    %c0_5 = arith.constant 0 : index
    %c0_6 = arith.constant 0 : index
    %8 = vector.load %arg4[%c0_5, %c0_6] : memref<45x128xf32, #tpu.memory_space<vmem>>, vector<1x128xf32>
    %9 = vector.shape_cast %8 : vector<1x128xf32> to vector<128xf32>
    %10 = vector.shape_cast %9 : vector<128xf32> to vector<1x128xf32>
    %11 = vector.extract_strided_slice %7 {offsets = [0, 0], sizes = [32, 128], strides = [1, 1]} : vector<40x128xf32> to vector<32x128xf32>
    %12 = vector.broadcast %10 : vector<1x128xf32> to vector<32x128xf32>
    %13 = arith.mulf %12, %11 : vector<32x128xf32>
    %14 = arith.addf %6, %13 : vector<32x128xf32>
    %c1 = arith.constant 1 : index
    %c0_7 = arith.constant 0 : index
    %15 = vector.load %arg4[%c1, %c0_7] : memref<45x128xf32, #tpu.memory_space<vmem>>, vector<1x128xf32>
    %16 = vector.shape_cast %15 : vector<1x128xf32> to vector<128xf32>
    %17 = vector.shape_cast %16 : vector<128xf32> to vector<1x128xf32>
    %18 = vector.extract_strided_slice %7 {offsets = [1, 0], sizes = [32, 128], strides = [1, 1]} : vector<40x128xf32> to vector<32x128xf32>
    %19 = vector.broadcast %17 : vector<1x128xf32> to vector<32x128xf32>
    %20 = arith.mulf %19, %18 : vector<32x128xf32>
    %21 = arith.addf %14, %20 : vector<32x128xf32>
    %c2 = arith.constant 2 : index
    %c0_8 = arith.constant 0 : index
    %22 = vector.load %arg4[%c2, %c0_8] : memref<45x128xf32, #tpu.memory_space<vmem>>, vector<1x128xf32>
    %23 = vector.shape_cast %22 : vector<1x128xf32> to vector<128xf32>
    %24 = vector.shape_cast %23 : vector<128xf32> to vector<1x128xf32>
    %25 = vector.extract_strided_slice %7 {offsets = [2, 0], sizes = [32, 128], strides = [1, 1]} : vector<40x128xf32> to vector<32x128xf32>
    %26 = vector.broadcast %24 : vector<1x128xf32> to vector<32x128xf32>
    %27 = arith.mulf %26, %25 : vector<32x128xf32>
    %28 = arith.addf %21, %27 : vector<32x128xf32>
    %c6_i32 = arith.constant 6 : i32
    %29 = tpu.dynamic_rotate %4 by %c6_i32 dim 1 : vector<40x128xf32>, i32 -> vector<40x128xf32>
    %c3 = arith.constant 3 : index
    %c0_9 = arith.constant 0 : index
    %30 = vector.load %arg4[%c3, %c0_9] : memref<45x128xf32, #tpu.memory_space<vmem>>, vector<1x128xf32>
    %31 = vector.shape_cast %30 : vector<1x128xf32> to vector<128xf32>
    %32 = vector.shape_cast %31 : vector<128xf32> to vector<1x128xf32>
    %33 = vector.extract_strided_slice %29 {offsets = [0, 0], sizes = [32, 128], strides = [1, 1]} : vector<40x128xf32> to vector<32x128xf32>
    %34 = vector.broadcast %32 : vector<1x128xf32> to vector<32x128xf32>
    %35 = arith.mulf %34, %33 : vector<32x128xf32>
    %36 = arith.addf %28, %35 : vector<32x128xf32>
    %c4 = arith.constant 4 : index
    %c0_10 = arith.constant 0 : index
    %37 = vector.load %arg4[%c4, %c0_10] : memref<45x128xf32, #tpu.memory_space<vmem>>, vector<1x128xf32>
    %38 = vector.shape_cast %37 : vector<1x128xf32> to vector<128xf32>
    %39 = vector.shape_cast %38 : vector<128xf32> to vector<1x128xf32>
    %40 = vector.extract_strided_slice %29 {offsets = [1, 0], sizes = [32, 128], strides = [1, 1]} : vector<40x128xf32> to vector<32x128xf32>
    %41 = vector.broadcast %39 : vector<1x128xf32> to vector<32x128xf32>
    %42 = arith.mulf %41, %40 : vector<32x128xf32>
    %43 = arith.addf %36, %42 : vector<32x128xf32>
    %c5 = arith.constant 5 : index
    %c0_11 = arith.constant 0 : index
    %44 = vector.load %arg4[%c5, %c0_11] : memref<45x128xf32, #tpu.memory_space<vmem>>, vector<1x128xf32>
    %45 = vector.shape_cast %44 : vector<1x128xf32> to vector<128xf32>
    %46 = vector.shape_cast %45 : vector<128xf32> to vector<1x128xf32>
    %47 = vector.extract_strided_slice %29 {offsets = [2, 0], sizes = [32, 128], strides = [1, 1]} : vector<40x128xf32> to vector<32x128xf32>
    %48 = vector.broadcast %46 : vector<1x128xf32> to vector<32x128xf32>
    %49 = arith.mulf %48, %47 : vector<32x128xf32>
    %50 = arith.addf %43, %49 : vector<32x128xf32>
    %c5_i32 = arith.constant 5 : i32
    %51 = tpu.dynamic_rotate %4 by %c5_i32 dim 1 : vector<40x128xf32>, i32 -> vector<40x128xf32>
    %c6 = arith.constant 6 : index
    %c0_12 = arith.constant 0 : index
    %52 = vector.load %arg4[%c6, %c0_12] : memref<45x128xf32, #tpu.memory_space<vmem>>, vector<1x128xf32>
    %53 = vector.shape_cast %52 : vector<1x128xf32> to vector<128xf32>
    %54 = vector.shape_cast %53 : vector<128xf32> to vector<1x128xf32>
    %55 = vector.extract_strided_slice %51 {offsets = [0, 0], sizes = [32, 128], strides = [1, 1]} : vector<40x128xf32> to vector<32x128xf32>
    %56 = vector.broadcast %54 : vector<1x128xf32> to vector<32x128xf32>
    %57 = arith.mulf %56, %55 : vector<32x128xf32>
    %58 = arith.addf %50, %57 : vector<32x128xf32>
    %c7 = arith.constant 7 : index
    %c0_13 = arith.constant 0 : index
    %59 = vector.load %arg4[%c7, %c0_13] : memref<45x128xf32, #tpu.memory_space<vmem>>, vector<1x128xf32>
    %60 = vector.shape_cast %59 : vector<1x128xf32> to vector<128xf32>
    %61 = vector.shape_cast %60 : vector<128xf32> to vector<1x128xf32>
    %62 = vector.extract_strided_slice %51 {offsets = [1, 0], sizes = [32, 128], strides = [1, 1]} : vector<40x128xf32> to vector<32x128xf32>
    %63 = vector.broadcast %61 : vector<1x128xf32> to vector<32x128xf32>
    %64 = arith.mulf %63, %62 : vector<32x128xf32>
    %65 = arith.addf %58, %64 : vector<32x128xf32>
    %c8 = arith.constant 8 : index
    %c0_14 = arith.constant 0 : index
    %66 = vector.load %arg4[%c8, %c0_14] : memref<45x128xf32, #tpu.memory_space<vmem>>, vector<1x128xf32>
    %67 = vector.shape_cast %66 : vector<1x128xf32> to vector<128xf32>
    %68 = vector.shape_cast %67 : vector<128xf32> to vector<1x128xf32>
    %69 = vector.extract_strided_slice %51 {offsets = [2, 0], sizes = [32, 128], strides = [1, 1]} : vector<40x128xf32> to vector<32x128xf32>
    %70 = vector.broadcast %68 : vector<1x128xf32> to vector<32x128xf32>
    %71 = arith.mulf %70, %69 : vector<32x128xf32>
    %72 = arith.addf %65, %71 : vector<32x128xf32>
    %c4_i32 = arith.constant 4 : i32
    %73 = tpu.dynamic_rotate %4 by %c4_i32 dim 1 : vector<40x128xf32>, i32 -> vector<40x128xf32>
    %c9 = arith.constant 9 : index
    %c0_15 = arith.constant 0 : index
    %74 = vector.load %arg4[%c9, %c0_15] : memref<45x128xf32, #tpu.memory_space<vmem>>, vector<1x128xf32>
    %75 = vector.shape_cast %74 : vector<1x128xf32> to vector<128xf32>
    %76 = vector.shape_cast %75 : vector<128xf32> to vector<1x128xf32>
    %77 = vector.extract_strided_slice %73 {offsets = [0, 0], sizes = [32, 128], strides = [1, 1]} : vector<40x128xf32> to vector<32x128xf32>
    %78 = vector.broadcast %76 : vector<1x128xf32> to vector<32x128xf32>
    %79 = arith.mulf %78, %77 : vector<32x128xf32>
    %80 = arith.addf %72, %79 : vector<32x128xf32>
    %c10 = arith.constant 10 : index
    %c0_16 = arith.constant 0 : index
    %81 = vector.load %arg4[%c10, %c0_16] : memref<45x128xf32, #tpu.memory_space<vmem>>, vector<1x128xf32>
    %82 = vector.shape_cast %81 : vector<1x128xf32> to vector<128xf32>
    %83 = vector.shape_cast %82 : vector<128xf32> to vector<1x128xf32>
    %84 = vector.extract_strided_slice %73 {offsets = [1, 0], sizes = [32, 128], strides = [1, 1]} : vector<40x128xf32> to vector<32x128xf32>
    %85 = vector.broadcast %83 : vector<1x128xf32> to vector<32x128xf32>
    %86 = arith.mulf %85, %84 : vector<32x128xf32>
    %87 = arith.addf %80, %86 : vector<32x128xf32>
    %c11 = arith.constant 11 : index
    %c0_17 = arith.constant 0 : index
    %88 = vector.load %arg4[%c11, %c0_17] : memref<45x128xf32, #tpu.memory_space<vmem>>, vector<1x128xf32>
    %89 = vector.shape_cast %88 : vector<1x128xf32> to vector<128xf32>
    %90 = vector.shape_cast %89 : vector<128xf32> to vector<1x128xf32>
    %91 = vector.extract_strided_slice %73 {offsets = [2, 0], sizes = [32, 128], strides = [1, 1]} : vector<40x128xf32> to vector<32x128xf32>
    %92 = vector.broadcast %90 : vector<1x128xf32> to vector<32x128xf32>
    %93 = arith.mulf %92, %91 : vector<32x128xf32>
    %94 = arith.addf %87, %93 : vector<32x128xf32>
    %c3_i32 = arith.constant 3 : i32
    %95 = tpu.dynamic_rotate %4 by %c3_i32 dim 1 : vector<40x128xf32>, i32 -> vector<40x128xf32>
    %c12 = arith.constant 12 : index
    %c0_18 = arith.constant 0 : index
    %96 = vector.load %arg4[%c12, %c0_18] : memref<45x128xf32, #tpu.memory_space<vmem>>, vector<1x128xf32>
    %97 = vector.shape_cast %96 : vector<1x128xf32> to vector<128xf32>
    %98 = vector.shape_cast %97 : vector<128xf32> to vector<1x128xf32>
    %99 = vector.extract_strided_slice %95 {offsets = [0, 0], sizes = [32, 128], strides = [1, 1]} : vector<40x128xf32> to vector<32x128xf32>
    %100 = vector.broadcast %98 : vector<1x128xf32> to vector<32x128xf32>
    %101 = arith.mulf %100, %99 : vector<32x128xf32>
    %102 = arith.addf %94, %101 : vector<32x128xf32>
    %c13 = arith.constant 13 : index
    %c0_19 = arith.constant 0 : index
    %103 = vector.load %arg4[%c13, %c0_19] : memref<45x128xf32, #tpu.memory_space<vmem>>, vector<1x128xf32>
    %104 = vector.shape_cast %103 : vector<1x128xf32> to vector<128xf32>
    %105 = vector.shape_cast %104 : vector<128xf32> to vector<1x128xf32>
    %106 = vector.extract_strided_slice %95 {offsets = [1, 0], sizes = [32, 128], strides = [1, 1]} : vector<40x128xf32> to vector<32x128xf32>
    %107 = vector.broadcast %105 : vector<1x128xf32> to vector<32x128xf32>
    %108 = arith.mulf %107, %106 : vector<32x128xf32>
    %109 = arith.addf %102, %108 : vector<32x128xf32>
    %c14 = arith.constant 14 : index
    %c0_20 = arith.constant 0 : index
    %110 = vector.load %arg4[%c14, %c0_20] : memref<45x128xf32, #tpu.memory_space<vmem>>, vector<1x128xf32>
    %111 = vector.shape_cast %110 : vector<1x128xf32> to vector<128xf32>
    %112 = vector.shape_cast %111 : vector<128xf32> to vector<1x128xf32>
    %113 = vector.extract_strided_slice %95 {offsets = [2, 0], sizes = [32, 128], strides = [1, 1]} : vector<40x128xf32> to vector<32x128xf32>
    %114 = vector.broadcast %112 : vector<1x128xf32> to vector<32x128xf32>
    %115 = arith.mulf %114, %113 : vector<32x128xf32>
    %116 = arith.addf %109, %115 : vector<32x128xf32>
    %c2_i32 = arith.constant 2 : i32
    %117 = tpu.dynamic_rotate %4 by %c2_i32 dim 1 : vector<40x128xf32>, i32 -> vector<40x128xf32>
    %c15 = arith.constant 15 : index
    %c0_21 = arith.constant 0 : index
    %118 = vector.load %arg4[%c15, %c0_21] : memref<45x128xf32, #tpu.memory_space<vmem>>, vector<1x128xf32>
    %119 = vector.shape_cast %118 : vector<1x128xf32> to vector<128xf32>
    %120 = vector.shape_cast %119 : vector<128xf32> to vector<1x128xf32>
    %121 = vector.extract_strided_slice %117 {offsets = [0, 0], sizes = [32, 128], strides = [1, 1]} : vector<40x128xf32> to vector<32x128xf32>
    %122 = vector.broadcast %120 : vector<1x128xf32> to vector<32x128xf32>
    %123 = arith.mulf %122, %121 : vector<32x128xf32>
    %124 = arith.addf %116, %123 : vector<32x128xf32>
    %c16 = arith.constant 16 : index
    %c0_22 = arith.constant 0 : index
    %125 = vector.load %arg4[%c16, %c0_22] : memref<45x128xf32, #tpu.memory_space<vmem>>, vector<1x128xf32>
    %126 = vector.shape_cast %125 : vector<1x128xf32> to vector<128xf32>
    %127 = vector.shape_cast %126 : vector<128xf32> to vector<1x128xf32>
    %128 = vector.extract_strided_slice %117 {offsets = [1, 0], sizes = [32, 128], strides = [1, 1]} : vector<40x128xf32> to vector<32x128xf32>
    %129 = vector.broadcast %127 : vector<1x128xf32> to vector<32x128xf32>
    %130 = arith.mulf %129, %128 : vector<32x128xf32>
    %131 = arith.addf %124, %130 : vector<32x128xf32>
    %c17 = arith.constant 17 : index
    %c0_23 = arith.constant 0 : index
    %132 = vector.load %arg4[%c17, %c0_23] : memref<45x128xf32, #tpu.memory_space<vmem>>, vector<1x128xf32>
    %133 = vector.shape_cast %132 : vector<1x128xf32> to vector<128xf32>
    %134 = vector.shape_cast %133 : vector<128xf32> to vector<1x128xf32>
    %135 = vector.extract_strided_slice %117 {offsets = [2, 0], sizes = [32, 128], strides = [1, 1]} : vector<40x128xf32> to vector<32x128xf32>
    %136 = vector.broadcast %134 : vector<1x128xf32> to vector<32x128xf32>
    %137 = arith.mulf %136, %135 : vector<32x128xf32>
    %138 = arith.addf %131, %137 : vector<32x128xf32>
    %c1_i32 = arith.constant 1 : i32
    %139 = tpu.dynamic_rotate %4 by %c1_i32 dim 1 : vector<40x128xf32>, i32 -> vector<40x128xf32>
    %c18 = arith.constant 18 : index
    %c0_24 = arith.constant 0 : index
    %140 = vector.load %arg4[%c18, %c0_24] : memref<45x128xf32, #tpu.memory_space<vmem>>, vector<1x128xf32>
    %141 = vector.shape_cast %140 : vector<1x128xf32> to vector<128xf32>
    %142 = vector.shape_cast %141 : vector<128xf32> to vector<1x128xf32>
    %143 = vector.extract_strided_slice %139 {offsets = [0, 0], sizes = [32, 128], strides = [1, 1]} : vector<40x128xf32> to vector<32x128xf32>
    %144 = vector.broadcast %142 : vector<1x128xf32> to vector<32x128xf32>
    %145 = arith.mulf %144, %143 : vector<32x128xf32>
    %146 = arith.addf %138, %145 : vector<32x128xf32>
    %c19 = arith.constant 19 : index
    %c0_25 = arith.constant 0 : index
    %147 = vector.load %arg4[%c19, %c0_25] : memref<45x128xf32, #tpu.memory_space<vmem>>, vector<1x128xf32>
    %148 = vector.shape_cast %147 : vector<1x128xf32> to vector<128xf32>
    %149 = vector.shape_cast %148 : vector<128xf32> to vector<1x128xf32>
    %150 = vector.extract_strided_slice %139 {offsets = [1, 0], sizes = [32, 128], strides = [1, 1]} : vector<40x128xf32> to vector<32x128xf32>
    %151 = vector.broadcast %149 : vector<1x128xf32> to vector<32x128xf32>
    %152 = arith.mulf %151, %150 : vector<32x128xf32>
    %153 = arith.addf %146, %152 : vector<32x128xf32>
    %c20 = arith.constant 20 : index
    %c0_26 = arith.constant 0 : index
    %154 = vector.load %arg4[%c20, %c0_26] : memref<45x128xf32, #tpu.memory_space<vmem>>, vector<1x128xf32>
    %155 = vector.shape_cast %154 : vector<1x128xf32> to vector<128xf32>
    %156 = vector.shape_cast %155 : vector<128xf32> to vector<1x128xf32>
    %157 = vector.extract_strided_slice %139 {offsets = [2, 0], sizes = [32, 128], strides = [1, 1]} : vector<40x128xf32> to vector<32x128xf32>
    %158 = vector.broadcast %156 : vector<1x128xf32> to vector<32x128xf32>
    %159 = arith.mulf %158, %157 : vector<32x128xf32>
    %160 = arith.addf %153, %159 : vector<32x128xf32>
    %c21 = arith.constant 21 : index
    %c0_27 = arith.constant 0 : index
    %161 = vector.load %arg4[%c21, %c0_27] : memref<45x128xf32, #tpu.memory_space<vmem>>, vector<1x128xf32>
    %162 = vector.shape_cast %161 : vector<1x128xf32> to vector<128xf32>
    %163 = vector.shape_cast %162 : vector<128xf32> to vector<1x128xf32>
    %164 = vector.extract_strided_slice %4 {offsets = [0, 0], sizes = [32, 128], strides = [1, 1]} : vector<40x128xf32> to vector<32x128xf32>
    %165 = vector.broadcast %163 : vector<1x128xf32> to vector<32x128xf32>
    %166 = arith.mulf %165, %164 : vector<32x128xf32>
    %167 = arith.addf %160, %166 : vector<32x128xf32>
    %c22 = arith.constant 22 : index
    %c0_28 = arith.constant 0 : index
    %168 = vector.load %arg4[%c22, %c0_28] : memref<45x128xf32, #tpu.memory_space<vmem>>, vector<1x128xf32>
    %169 = vector.shape_cast %168 : vector<1x128xf32> to vector<128xf32>
    %170 = vector.shape_cast %169 : vector<128xf32> to vector<1x128xf32>
    %171 = vector.extract_strided_slice %4 {offsets = [1, 0], sizes = [32, 128], strides = [1, 1]} : vector<40x128xf32> to vector<32x128xf32>
    %172 = vector.broadcast %170 : vector<1x128xf32> to vector<32x128xf32>
    %173 = arith.mulf %172, %171 : vector<32x128xf32>
    %174 = arith.addf %167, %173 : vector<32x128xf32>
    %c23 = arith.constant 23 : index
    %c0_29 = arith.constant 0 : index
    %175 = vector.load %arg4[%c23, %c0_29] : memref<45x128xf32, #tpu.memory_space<vmem>>, vector<1x128xf32>
    %176 = vector.shape_cast %175 : vector<1x128xf32> to vector<128xf32>
    %177 = vector.shape_cast %176 : vector<128xf32> to vector<1x128xf32>
    %178 = vector.extract_strided_slice %4 {offsets = [2, 0], sizes = [32, 128], strides = [1, 1]} : vector<40x128xf32> to vector<32x128xf32>
    %179 = vector.broadcast %177 : vector<1x128xf32> to vector<32x128xf32>
    %180 = arith.mulf %179, %178 : vector<32x128xf32>
    %181 = arith.addf %174, %180 : vector<32x128xf32>
    %c127_i32 = arith.constant 127 : i32
    %182 = tpu.dynamic_rotate %4 by %c127_i32 dim 1 : vector<40x128xf32>, i32 -> vector<40x128xf32>
    %c24 = arith.constant 24 : index
    %c0_30 = arith.constant 0 : index
    %183 = vector.load %arg4[%c24, %c0_30] : memref<45x128xf32, #tpu.memory_space<vmem>>, vector<1x128xf32>
    %184 = vector.shape_cast %183 : vector<1x128xf32> to vector<128xf32>
    %185 = vector.shape_cast %184 : vector<128xf32> to vector<1x128xf32>
    %186 = vector.extract_strided_slice %182 {offsets = [0, 0], sizes = [32, 128], strides = [1, 1]} : vector<40x128xf32> to vector<32x128xf32>
    %187 = vector.broadcast %185 : vector<1x128xf32> to vector<32x128xf32>
    %188 = arith.mulf %187, %186 : vector<32x128xf32>
    %189 = arith.addf %181, %188 : vector<32x128xf32>
    %c25 = arith.constant 25 : index
    %c0_31 = arith.constant 0 : index
    %190 = vector.load %arg4[%c25, %c0_31] : memref<45x128xf32, #tpu.memory_space<vmem>>, vector<1x128xf32>
    %191 = vector.shape_cast %190 : vector<1x128xf32> to vector<128xf32>
    %192 = vector.shape_cast %191 : vector<128xf32> to vector<1x128xf32>
    %193 = vector.extract_strided_slice %182 {offsets = [1, 0], sizes = [32, 128], strides = [1, 1]} : vector<40x128xf32> to vector<32x128xf32>
    %194 = vector.broadcast %192 : vector<1x128xf32> to vector<32x128xf32>
    %195 = arith.mulf %194, %193 : vector<32x128xf32>
    %196 = arith.addf %189, %195 : vector<32x128xf32>
    %c26 = arith.constant 26 : index
    %c0_32 = arith.constant 0 : index
    %197 = vector.load %arg4[%c26, %c0_32] : memref<45x128xf32, #tpu.memory_space<vmem>>, vector<1x128xf32>
    %198 = vector.shape_cast %197 : vector<1x128xf32> to vector<128xf32>
    %199 = vector.shape_cast %198 : vector<128xf32> to vector<1x128xf32>
    %200 = vector.extract_strided_slice %182 {offsets = [2, 0], sizes = [32, 128], strides = [1, 1]} : vector<40x128xf32> to vector<32x128xf32>
    %201 = vector.broadcast %199 : vector<1x128xf32> to vector<32x128xf32>
    %202 = arith.mulf %201, %200 : vector<32x128xf32>
    %203 = arith.addf %196, %202 : vector<32x128xf32>
    %c126_i32 = arith.constant 126 : i32
    %204 = tpu.dynamic_rotate %4 by %c126_i32 dim 1 : vector<40x128xf32>, i32 -> vector<40x128xf32>
    %c27 = arith.constant 27 : index
    %c0_33 = arith.constant 0 : index
    %205 = vector.load %arg4[%c27, %c0_33] : memref<45x128xf32, #tpu.memory_space<vmem>>, vector<1x128xf32>
    %206 = vector.shape_cast %205 : vector<1x128xf32> to vector<128xf32>
    %207 = vector.shape_cast %206 : vector<128xf32> to vector<1x128xf32>
    %208 = vector.extract_strided_slice %204 {offsets = [0, 0], sizes = [32, 128], strides = [1, 1]} : vector<40x128xf32> to vector<32x128xf32>
    %209 = vector.broadcast %207 : vector<1x128xf32> to vector<32x128xf32>
    %210 = arith.mulf %209, %208 : vector<32x128xf32>
    %211 = arith.addf %203, %210 : vector<32x128xf32>
    %c28 = arith.constant 28 : index
    %c0_34 = arith.constant 0 : index
    %212 = vector.load %arg4[%c28, %c0_34] : memref<45x128xf32, #tpu.memory_space<vmem>>, vector<1x128xf32>
    %213 = vector.shape_cast %212 : vector<1x128xf32> to vector<128xf32>
    %214 = vector.shape_cast %213 : vector<128xf32> to vector<1x128xf32>
    %215 = vector.extract_strided_slice %204 {offsets = [1, 0], sizes = [32, 128], strides = [1, 1]} : vector<40x128xf32> to vector<32x128xf32>
    %216 = vector.broadcast %214 : vector<1x128xf32> to vector<32x128xf32>
    %217 = arith.mulf %216, %215 : vector<32x128xf32>
    %218 = arith.addf %211, %217 : vector<32x128xf32>
    %c29 = arith.constant 29 : index
    %c0_35 = arith.constant 0 : index
    %219 = vector.load %arg4[%c29, %c0_35] : memref<45x128xf32, #tpu.memory_space<vmem>>, vector<1x128xf32>
    %220 = vector.shape_cast %219 : vector<1x128xf32> to vector<128xf32>
    %221 = vector.shape_cast %220 : vector<128xf32> to vector<1x128xf32>
    %222 = vector.extract_strided_slice %204 {offsets = [2, 0], sizes = [32, 128], strides = [1, 1]} : vector<40x128xf32> to vector<32x128xf32>
    %223 = vector.broadcast %221 : vector<1x128xf32> to vector<32x128xf32>
    %224 = arith.mulf %223, %222 : vector<32x128xf32>
    %225 = arith.addf %218, %224 : vector<32x128xf32>
    %c125_i32 = arith.constant 125 : i32
    %226 = tpu.dynamic_rotate %4 by %c125_i32 dim 1 : vector<40x128xf32>, i32 -> vector<40x128xf32>
    %c30 = arith.constant 30 : index
    %c0_36 = arith.constant 0 : index
    %227 = vector.load %arg4[%c30, %c0_36] : memref<45x128xf32, #tpu.memory_space<vmem>>, vector<1x128xf32>
    %228 = vector.shape_cast %227 : vector<1x128xf32> to vector<128xf32>
    %229 = vector.shape_cast %228 : vector<128xf32> to vector<1x128xf32>
    %230 = vector.extract_strided_slice %226 {offsets = [0, 0], sizes = [32, 128], strides = [1, 1]} : vector<40x128xf32> to vector<32x128xf32>
    %231 = vector.broadcast %229 : vector<1x128xf32> to vector<32x128xf32>
    %232 = arith.mulf %231, %230 : vector<32x128xf32>
    %233 = arith.addf %225, %232 : vector<32x128xf32>
    %c31 = arith.constant 31 : index
    %c0_37 = arith.constant 0 : index
    %234 = vector.load %arg4[%c31, %c0_37] : memref<45x128xf32, #tpu.memory_space<vmem>>, vector<1x128xf32>
    %235 = vector.shape_cast %234 : vector<1x128xf32> to vector<128xf32>
    %236 = vector.shape_cast %235 : vector<128xf32> to vector<1x128xf32>
    %237 = vector.extract_strided_slice %226 {offsets = [1, 0], sizes = [32, 128], strides = [1, 1]} : vector<40x128xf32> to vector<32x128xf32>
    %238 = vector.broadcast %236 : vector<1x128xf32> to vector<32x128xf32>
    %239 = arith.mulf %238, %237 : vector<32x128xf32>
    %240 = arith.addf %233, %239 : vector<32x128xf32>
    %c32 = arith.constant 32 : index
    %c0_38 = arith.constant 0 : index
    %241 = vector.load %arg4[%c32, %c0_38] : memref<45x128xf32, #tpu.memory_space<vmem>>, vector<1x128xf32>
    %242 = vector.shape_cast %241 : vector<1x128xf32> to vector<128xf32>
    %243 = vector.shape_cast %242 : vector<128xf32> to vector<1x128xf32>
    %244 = vector.extract_strided_slice %226 {offsets = [2, 0], sizes = [32, 128], strides = [1, 1]} : vector<40x128xf32> to vector<32x128xf32>
    %245 = vector.broadcast %243 : vector<1x128xf32> to vector<32x128xf32>
    %246 = arith.mulf %245, %244 : vector<32x128xf32>
    %247 = arith.addf %240, %246 : vector<32x128xf32>
    %c124_i32 = arith.constant 124 : i32
    %248 = tpu.dynamic_rotate %4 by %c124_i32 dim 1 : vector<40x128xf32>, i32 -> vector<40x128xf32>
    %c33 = arith.constant 33 : index
    %c0_39 = arith.constant 0 : index
    %249 = vector.load %arg4[%c33, %c0_39] : memref<45x128xf32, #tpu.memory_space<vmem>>, vector<1x128xf32>
    %250 = vector.shape_cast %249 : vector<1x128xf32> to vector<128xf32>
    %251 = vector.shape_cast %250 : vector<128xf32> to vector<1x128xf32>
    %252 = vector.extract_strided_slice %248 {offsets = [0, 0], sizes = [32, 128], strides = [1, 1]} : vector<40x128xf32> to vector<32x128xf32>
    %253 = vector.broadcast %251 : vector<1x128xf32> to vector<32x128xf32>
    %254 = arith.mulf %253, %252 : vector<32x128xf32>
    %255 = arith.addf %247, %254 : vector<32x128xf32>
    %c34 = arith.constant 34 : index
    %c0_40 = arith.constant 0 : index
    %256 = vector.load %arg4[%c34, %c0_40] : memref<45x128xf32, #tpu.memory_space<vmem>>, vector<1x128xf32>
    %257 = vector.shape_cast %256 : vector<1x128xf32> to vector<128xf32>
    %258 = vector.shape_cast %257 : vector<128xf32> to vector<1x128xf32>
    %259 = vector.extract_strided_slice %248 {offsets = [1, 0], sizes = [32, 128], strides = [1, 1]} : vector<40x128xf32> to vector<32x128xf32>
    %260 = vector.broadcast %258 : vector<1x128xf32> to vector<32x128xf32>
    %261 = arith.mulf %260, %259 : vector<32x128xf32>
    %262 = arith.addf %255, %261 : vector<32x128xf32>
    %c35 = arith.constant 35 : index
    %c0_41 = arith.constant 0 : index
    %263 = vector.load %arg4[%c35, %c0_41] : memref<45x128xf32, #tpu.memory_space<vmem>>, vector<1x128xf32>
    %264 = vector.shape_cast %263 : vector<1x128xf32> to vector<128xf32>
    %265 = vector.shape_cast %264 : vector<128xf32> to vector<1x128xf32>
    %266 = vector.extract_strided_slice %248 {offsets = [2, 0], sizes = [32, 128], strides = [1, 1]} : vector<40x128xf32> to vector<32x128xf32>
    %267 = vector.broadcast %265 : vector<1x128xf32> to vector<32x128xf32>
    %268 = arith.mulf %267, %266 : vector<32x128xf32>
    %269 = arith.addf %262, %268 : vector<32x128xf32>
    %c123_i32 = arith.constant 123 : i32
    %270 = tpu.dynamic_rotate %4 by %c123_i32 dim 1 : vector<40x128xf32>, i32 -> vector<40x128xf32>
    %c36 = arith.constant 36 : index
    %c0_42 = arith.constant 0 : index
    %271 = vector.load %arg4[%c36, %c0_42] : memref<45x128xf32, #tpu.memory_space<vmem>>, vector<1x128xf32>
    %272 = vector.shape_cast %271 : vector<1x128xf32> to vector<128xf32>
    %273 = vector.shape_cast %272 : vector<128xf32> to vector<1x128xf32>
    %274 = vector.extract_strided_slice %270 {offsets = [0, 0], sizes = [32, 128], strides = [1, 1]} : vector<40x128xf32> to vector<32x128xf32>
    %275 = vector.broadcast %273 : vector<1x128xf32> to vector<32x128xf32>
    %276 = arith.mulf %275, %274 : vector<32x128xf32>
    %277 = arith.addf %269, %276 : vector<32x128xf32>
    %c37 = arith.constant 37 : index
    %c0_43 = arith.constant 0 : index
    %278 = vector.load %arg4[%c37, %c0_43] : memref<45x128xf32, #tpu.memory_space<vmem>>, vector<1x128xf32>
    %279 = vector.shape_cast %278 : vector<1x128xf32> to vector<128xf32>
    %280 = vector.shape_cast %279 : vector<128xf32> to vector<1x128xf32>
    %281 = vector.extract_strided_slice %270 {offsets = [1, 0], sizes = [32, 128], strides = [1, 1]} : vector<40x128xf32> to vector<32x128xf32>
    %282 = vector.broadcast %280 : vector<1x128xf32> to vector<32x128xf32>
    %283 = arith.mulf %282, %281 : vector<32x128xf32>
    %284 = arith.addf %277, %283 : vector<32x128xf32>
    %c38 = arith.constant 38 : index
    %c0_44 = arith.constant 0 : index
    %285 = vector.load %arg4[%c38, %c0_44] : memref<45x128xf32, #tpu.memory_space<vmem>>, vector<1x128xf32>
    %286 = vector.shape_cast %285 : vector<1x128xf32> to vector<128xf32>
    %287 = vector.shape_cast %286 : vector<128xf32> to vector<1x128xf32>
    %288 = vector.extract_strided_slice %270 {offsets = [2, 0], sizes = [32, 128], strides = [1, 1]} : vector<40x128xf32> to vector<32x128xf32>
    %289 = vector.broadcast %287 : vector<1x128xf32> to vector<32x128xf32>
    %290 = arith.mulf %289, %288 : vector<32x128xf32>
    %291 = arith.addf %284, %290 : vector<32x128xf32>
    %c122_i32 = arith.constant 122 : i32
    %292 = tpu.dynamic_rotate %4 by %c122_i32 dim 1 : vector<40x128xf32>, i32 -> vector<40x128xf32>
    %c39 = arith.constant 39 : index
    %c0_45 = arith.constant 0 : index
    %293 = vector.load %arg4[%c39, %c0_45] : memref<45x128xf32, #tpu.memory_space<vmem>>, vector<1x128xf32>
    %294 = vector.shape_cast %293 : vector<1x128xf32> to vector<128xf32>
    %295 = vector.shape_cast %294 : vector<128xf32> to vector<1x128xf32>
    %296 = vector.extract_strided_slice %292 {offsets = [0, 0], sizes = [32, 128], strides = [1, 1]} : vector<40x128xf32> to vector<32x128xf32>
    %297 = vector.broadcast %295 : vector<1x128xf32> to vector<32x128xf32>
    %298 = arith.mulf %297, %296 : vector<32x128xf32>
    %299 = arith.addf %291, %298 : vector<32x128xf32>
    %c40 = arith.constant 40 : index
    %c0_46 = arith.constant 0 : index
    %300 = vector.load %arg4[%c40, %c0_46] : memref<45x128xf32, #tpu.memory_space<vmem>>, vector<1x128xf32>
    %301 = vector.shape_cast %300 : vector<1x128xf32> to vector<128xf32>
    %302 = vector.shape_cast %301 : vector<128xf32> to vector<1x128xf32>
    %303 = vector.extract_strided_slice %292 {offsets = [1, 0], sizes = [32, 128], strides = [1, 1]} : vector<40x128xf32> to vector<32x128xf32>
    %304 = vector.broadcast %302 : vector<1x128xf32> to vector<32x128xf32>
    %305 = arith.mulf %304, %303 : vector<32x128xf32>
    %306 = arith.addf %299, %305 : vector<32x128xf32>
    %c41 = arith.constant 41 : index
    %c0_47 = arith.constant 0 : index
    %307 = vector.load %arg4[%c41, %c0_47] : memref<45x128xf32, #tpu.memory_space<vmem>>, vector<1x128xf32>
    %308 = vector.shape_cast %307 : vector<1x128xf32> to vector<128xf32>
    %309 = vector.shape_cast %308 : vector<128xf32> to vector<1x128xf32>
    %310 = vector.extract_strided_slice %292 {offsets = [2, 0], sizes = [32, 128], strides = [1, 1]} : vector<40x128xf32> to vector<32x128xf32>
    %311 = vector.broadcast %309 : vector<1x128xf32> to vector<32x128xf32>
    %312 = arith.mulf %311, %310 : vector<32x128xf32>
    %313 = arith.addf %306, %312 : vector<32x128xf32>
    %c121_i32 = arith.constant 121 : i32
    %314 = tpu.dynamic_rotate %4 by %c121_i32 dim 1 : vector<40x128xf32>, i32 -> vector<40x128xf32>
    %c42 = arith.constant 42 : index
    %c0_48 = arith.constant 0 : index
    %315 = vector.load %arg4[%c42, %c0_48] : memref<45x128xf32, #tpu.memory_space<vmem>>, vector<1x128xf32>
    %316 = vector.shape_cast %315 : vector<1x128xf32> to vector<128xf32>
    %317 = vector.shape_cast %316 : vector<128xf32> to vector<1x128xf32>
    %318 = vector.extract_strided_slice %314 {offsets = [0, 0], sizes = [32, 128], strides = [1, 1]} : vector<40x128xf32> to vector<32x128xf32>
    %319 = vector.broadcast %317 : vector<1x128xf32> to vector<32x128xf32>
    %320 = arith.mulf %319, %318 : vector<32x128xf32>
    %321 = arith.addf %313, %320 : vector<32x128xf32>
    %c43 = arith.constant 43 : index
    %c0_49 = arith.constant 0 : index
    %322 = vector.load %arg4[%c43, %c0_49] : memref<45x128xf32, #tpu.memory_space<vmem>>, vector<1x128xf32>
    %323 = vector.shape_cast %322 : vector<1x128xf32> to vector<128xf32>
    %324 = vector.shape_cast %323 : vector<128xf32> to vector<1x128xf32>
    %325 = vector.extract_strided_slice %314 {offsets = [1, 0], sizes = [32, 128], strides = [1, 1]} : vector<40x128xf32> to vector<32x128xf32>
    %326 = vector.broadcast %324 : vector<1x128xf32> to vector<32x128xf32>
    %327 = arith.mulf %326, %325 : vector<32x128xf32>
    %328 = arith.addf %321, %327 : vector<32x128xf32>
    %c44 = arith.constant 44 : index
    %c0_50 = arith.constant 0 : index
    %329 = vector.load %arg4[%c44, %c0_50] : memref<45x128xf32, #tpu.memory_space<vmem>>, vector<1x128xf32>
    %330 = vector.shape_cast %329 : vector<1x128xf32> to vector<128xf32>
    %331 = vector.shape_cast %330 : vector<128xf32> to vector<1x128xf32>
    %332 = vector.extract_strided_slice %314 {offsets = [2, 0], sizes = [32, 128], strides = [1, 1]} : vector<40x128xf32> to vector<32x128xf32>
    %333 = vector.broadcast %331 : vector<1x128xf32> to vector<32x128xf32>
    %334 = arith.mulf %333, %332 : vector<32x128xf32>
    %335 = arith.addf %328, %334 : vector<32x128xf32>
    %c0_51 = arith.constant 0 : index
    %c0_52 = arith.constant 0 : index
    %336 = vector.load %arg5[%c0_51, %c0_52] : memref<8x128xf32, #tpu.memory_space<vmem>>, vector<1x128xf32>
    %337 = vector.shape_cast %336 : vector<1x128xf32> to vector<128xf32>
    %338 = vector.shape_cast %337 : vector<128xf32> to vector<1x128xf32>
    %339 = vector.broadcast %338 : vector<1x128xf32> to vector<32x128xf32>
    %340 = arith.addf %335, %339 : vector<32x128xf32>
    %cst_53 = arith.constant 0.000000e+00 : f32
    %341 = vector.broadcast %cst_53 : f32 to vector<32x128xf32>
    %342 = arith.maximumf %340, %341 : vector<32x128xf32>
    %343 = arith.addf %342, %5 : vector<32x128xf32>
    %cst_54 = arith.constant dense<0.000000e+00> : vector<32xf32>
    %344 = vector.multi_reduction <add>, %343, %cst_54 [1] : vector<32x128xf32> to vector<32xf32>
    %345 = vector.shape_cast %344 : vector<32xf32> to vector<32x1xf32>
    %cst_55 = arith.constant 7.812500e-03 : f32
    %346 = vector.broadcast %cst_55 : f32 to vector<32x1xf32>
    %347 = arith.mulf %345, %346 : vector<32x1xf32>
    %348 = arith.mulf %343, %343 : vector<32x128xf32>
    %cst_56 = arith.constant dense<0.000000e+00> : vector<32xf32>
    %349 = vector.multi_reduction <add>, %348, %cst_56 [1] : vector<32x128xf32> to vector<32xf32>
    %350 = vector.shape_cast %349 : vector<32xf32> to vector<32x1xf32>
    %cst_57 = arith.constant 7.812500e-03 : f32
    %351 = vector.broadcast %cst_57 : f32 to vector<32x1xf32>
    %352 = arith.mulf %350, %351 : vector<32x1xf32>
    %353 = arith.mulf %347, %347 : vector<32x1xf32>
    %354 = arith.subf %352, %353 : vector<32x1xf32>
    %cst_58 = arith.constant 0.000000e+00 : f32
    %355 = vector.broadcast %cst_58 : f32 to vector<32x1xf32>
    %356 = arith.maximumf %354, %355 : vector<32x1xf32>
    %357 = vector.broadcast %347 : vector<32x1xf32> to vector<32x128xf32>
    %358 = arith.subf %343, %357 : vector<32x128xf32>
    %cst_59 = arith.constant 9.99999996E-13 : f32
    %359 = vector.broadcast %cst_59 : f32 to vector<32x1xf32>
    %360 = arith.addf %356, %359 : vector<32x1xf32>
    %361 = math.rsqrt %360 : vector<32x1xf32>
    %362 = vector.broadcast %361 : vector<32x1xf32> to vector<32x128xf32>
    %363 = arith.mulf %358, %362 : vector<32x128xf32>
    %c3_60 = arith.constant 3 : index
    %c0_61 = arith.constant 0 : index
    %364 = vector.load %arg5[%c3_60, %c0_61] : memref<8x128xf32, #tpu.memory_space<vmem>>, vector<1x128xf32>
    %365 = vector.shape_cast %364 : vector<1x128xf32> to vector<128xf32>
    %366 = vector.shape_cast %365 : vector<128xf32> to vector<1x128xf32>
    %367 = vector.broadcast %366 : vector<1x128xf32> to vector<32x128xf32>
    %368 = arith.mulf %363, %367 : vector<32x128xf32>
    %c4_62 = arith.constant 4 : index
    %c0_63 = arith.constant 0 : index
    %369 = vector.load %arg5[%c4_62, %c0_63] : memref<8x128xf32, #tpu.memory_space<vmem>>, vector<1x128xf32>
    %370 = vector.shape_cast %369 : vector<1x128xf32> to vector<128xf32>
    %371 = vector.shape_cast %370 : vector<128xf32> to vector<1x128xf32>
    %372 = vector.broadcast %371 : vector<1x128xf32> to vector<32x128xf32>
    %373 = arith.addf %368, %372 : vector<32x128xf32>
    %374 = arith.truncf %373 : vector<32x128xf32> to vector<32x128xbf16>
    %c0_64 = arith.constant 0 : index
    %c0_65 = arith.constant 0 : index
    %375 = vector.load %arg6[%c0_64, %c0_65] : memref<128x128xbf16, #tpu.memory_space<vmem>>, vector<128x128xbf16>
    %cst_66 = arith.constant dense<0.000000e+00> : vector<32x128xf32>
    %376 = tpu.matmul %374, %375, %cst_66 {dimension_numbers = #tpu.dot_dimension_numbers<[1], [0], [0], [1], [0, 0, 1, 1], [], []>} : vector<32x128xbf16>, vector<128x128xbf16>, vector<32x128xf32> -> vector<32x128xf32>
    %c1_67 = arith.constant 1 : index
    %c0_68 = arith.constant 0 : index
    %377 = vector.load %arg5[%c1_67, %c0_68] : memref<8x128xf32, #tpu.memory_space<vmem>>, vector<1x128xf32>
    %378 = vector.shape_cast %377 : vector<1x128xf32> to vector<128xf32>
    %379 = vector.shape_cast %378 : vector<128xf32> to vector<1x128xf32>
    %380 = vector.broadcast %379 : vector<1x128xf32> to vector<32x128xf32>
    %381 = arith.addf %376, %380 : vector<32x128xf32>
    %cst_69 = arith.constant 0.000000e+00 : f32
    %382 = vector.broadcast %cst_69 : f32 to vector<32x128xf32>
    %383 = arith.maximumf %381, %382 : vector<32x128xf32>
    %384 = arith.truncf %383 : vector<32x128xf32> to vector<32x128xbf16>
    %c0_70 = arith.constant 0 : index
    %c0_71 = arith.constant 0 : index
    %385 = vector.load %arg7[%c0_70, %c0_71] : memref<128x128xbf16, #tpu.memory_space<vmem>>, vector<128x128xbf16>
    %cst_72 = arith.constant dense<0.000000e+00> : vector<32x128xf32>
    %386 = tpu.matmul %384, %385, %cst_72 {dimension_numbers = #tpu.dot_dimension_numbers<[1], [0], [0], [1], [0, 0, 1, 1], [], []>} : vector<32x128xbf16>, vector<128x128xbf16>, vector<32x128xf32> -> vector<32x128xf32>
    %c2_73 = arith.constant 2 : index
    %c0_74 = arith.constant 0 : index
    %387 = vector.load %arg5[%c2_73, %c0_74] : memref<8x128xf32, #tpu.memory_space<vmem>>, vector<1x128xf32>
    %388 = vector.shape_cast %387 : vector<1x128xf32> to vector<128xf32>
    %389 = vector.shape_cast %388 : vector<128xf32> to vector<1x128xf32>
    %390 = vector.broadcast %389 : vector<1x128xf32> to vector<32x128xf32>
    %391 = arith.addf %386, %390 : vector<32x128xf32>
    %392 = arith.addf %391, %373 : vector<32x128xf32>
    %cst_75 = arith.constant dense<0.000000e+00> : vector<32xf32>
    %393 = vector.multi_reduction <add>, %392, %cst_75 [1] : vector<32x128xf32> to vector<32xf32>
    %394 = vector.shape_cast %393 : vector<32xf32> to vector<32x1xf32>
    %cst_76 = arith.constant 7.812500e-03 : f32
    %395 = vector.broadcast %cst_76 : f32 to vector<32x1xf32>
    %396 = arith.mulf %394, %395 : vector<32x1xf32>
    %397 = arith.mulf %392, %392 : vector<32x128xf32>
    %cst_77 = arith.constant dense<0.000000e+00> : vector<32xf32>
    %398 = vector.multi_reduction <add>, %397, %cst_77 [1] : vector<32x128xf32> to vector<32xf32>
    %399 = vector.shape_cast %398 : vector<32xf32> to vector<32x1xf32>
    %cst_78 = arith.constant 7.812500e-03 : f32
    %400 = vector.broadcast %cst_78 : f32 to vector<32x1xf32>
    %401 = arith.mulf %399, %400 : vector<32x1xf32>
    %402 = arith.mulf %396, %396 : vector<32x1xf32>
    %403 = arith.subf %401, %402 : vector<32x1xf32>
    %cst_79 = arith.constant 0.000000e+00 : f32
    %404 = vector.broadcast %cst_79 : f32 to vector<32x1xf32>
    %405 = arith.maximumf %403, %404 : vector<32x1xf32>
    %406 = vector.broadcast %396 : vector<32x1xf32> to vector<32x128xf32>
    %407 = arith.subf %392, %406 : vector<32x128xf32>
    %cst_80 = arith.constant 9.99999996E-13 : f32
    %408 = vector.broadcast %cst_80 : f32 to vector<32x1xf32>
    %409 = arith.addf %405, %408 : vector<32x1xf32>
    %410 = math.rsqrt %409 : vector<32x1xf32>
    %411 = vector.broadcast %410 : vector<32x1xf32> to vector<32x128xf32>
    %412 = arith.mulf %407, %411 : vector<32x128xf32>
    %c5_81 = arith.constant 5 : index
    %c0_82 = arith.constant 0 : index
    %413 = vector.load %arg5[%c5_81, %c0_82] : memref<8x128xf32, #tpu.memory_space<vmem>>, vector<1x128xf32>
    %414 = vector.shape_cast %413 : vector<1x128xf32> to vector<128xf32>
    %415 = vector.shape_cast %414 : vector<128xf32> to vector<1x128xf32>
    %416 = vector.broadcast %415 : vector<1x128xf32> to vector<32x128xf32>
    %417 = arith.mulf %412, %416 : vector<32x128xf32>
    %c6_83 = arith.constant 6 : index
    %c0_84 = arith.constant 0 : index
    %418 = vector.load %arg5[%c6_83, %c0_84] : memref<8x128xf32, #tpu.memory_space<vmem>>, vector<1x128xf32>
    %419 = vector.shape_cast %418 : vector<1x128xf32> to vector<128xf32>
    %420 = vector.shape_cast %419 : vector<128xf32> to vector<1x128xf32>
    %421 = vector.broadcast %420 : vector<1x128xf32> to vector<32x128xf32>
    %422 = arith.addf %417, %421 : vector<32x128xf32>
    %c0_85 = arith.constant 0 : index
    %c0_86 = arith.constant 0 : index
    %c0_87 = arith.constant 0 : index
    %423 = vector.load %arg8[%c0_85, %c0_86, %c0_87] : memref<1x32x128xf32, #tpu.memory_space<vmem>>, vector<1x32x128xf32>
    %424 = vector.shape_cast %423 : vector<1x32x128xf32> to vector<32x128xf32>
    %425 = vector.shape_cast %422 : vector<32x128xf32> to vector<1x32x128xf32>
    tpu.vector_store %arg8[%c0_85, %c0_86, %c0_87], %425 {strides = array<i32>} : memref<1x32x128xf32, #tpu.memory_space<vmem>>, vector<1x32x128xf32>,
    return
  }
  func.func @transform_0(%arg0: i32, %arg1: i32) -> (i32, i32, i32) {
    %c0_i32 = arith.constant 0 : i32
    %c0_i32_0 = arith.constant 0 : i32
    return %arg0, %arg1, %c0_i32 : i32, i32, i32
  }
  func.func @transform_1(%arg0: i32, %arg1: i32) -> (i32, i32, i32) {
    %c1_i32 = arith.constant 1 : i32
    %0 = arith.addi %arg1, %c1_i32 : i32
    %c4_i32 = arith.constant 4 : i32
    %1 = arith.muli %0, %c4_i32 : i32
    %c0_i32 = arith.constant 0 : i32
    %c0_i32_0 = arith.constant 0 : i32
    return %arg0, %1, %c0_i32 : i32, i32, i32
  }
  func.func @transform_2(%arg0: i32, %arg1: i32) -> (i32, i32) {
    %c0_i32 = arith.constant 0 : i32
    %c0_i32_0 = arith.constant 0 : i32
    %c0_i32_1 = arith.constant 0 : i32
    return %c0_i32, %c0_i32_0 : i32, i32
  }
  func.func @transform_3(%arg0: i32, %arg1: i32) -> (i32, i32) {
    %c0_i32 = arith.constant 0 : i32
    %c0_i32_0 = arith.constant 0 : i32
    %c0_i32_1 = arith.constant 0 : i32
    return %c0_i32, %c0_i32_0 : i32, i32
  }
  func.func @transform_4(%arg0: i32, %arg1: i32) -> (i32, i32) {
    %c0_i32 = arith.constant 0 : i32
    %c0_i32_0 = arith.constant 0 : i32
    %c0_i32_1 = arith.constant 0 : i32
    return %c0_i32, %c0_i32_0 : i32, i32
  }
  func.func @transform_5(%arg0: i32, %arg1: i32) -> (i32, i32) {
    %c0_i32 = arith.constant 0 : i32
    %c0_i32_0 = arith.constant 0 : i32
    %c0_i32_1 = arith.constant 0 : i32
    return %c0_i32, %c0_i32_0 : i32, i32
  }
  func.func @transform_6(%arg0: i32, %arg1: i32) -> (i32, i32, i32) {
    %c0_i32 = arith.constant 0 : i32
    %c0_i32_0 = arith.constant 0 : i32
    return %arg0, %arg1, %c0_i32 : i32, i32, i32
  }
}

</mosaic_0001>

<llo_original>
// kernel: tpu_custom_call.1
$region0: #{tpu_custom_call.1}
  #allocation0 [shape = 'u32[]', space=smem, size = 0x4, offset = 0x4, fixed_abs, tag = 'smem constant byte address 0x4 - core index']
  #allocation1 [shape = 'u32[144,128]{1,0:T(1,128)}', space=vmem, size = 0x12000, scoped, tag = 'internal scratch']
  %s0 = inlined_call_operand.hbm [shape: f32[2,96,128], index: 0, kind: input, shape index: {}]
  %s1 = inlined_call_operand.hbm [shape: f32[2,96,128], index: 1, kind: input, shape index: {}]
  %s2 = inlined_call_operand.hbm [shape: f32[45,128], index: 2, kind: input, shape index: {}]
  %s3 = inlined_call_operand.vmem [shape: f32[8,128], index: 3, kind: input, shape index: {}]
  %s4 = inlined_call_operand.hbm [shape: bf16[128,128], index: 4, kind: input, shape index: {}]
  %s5 = inlined_call_operand.hbm [shape: bf16[128,128], index: 5, kind: input, shape index: {}]
  %s6 = inlined_call_operand.hbm [shape: f32[2,64,128], index: 6, kind: output, shape index: {}]
  %s7 = sld [smem:[#allocation0]]
  $region77: #{tpu_custom_call.1} parent=0
    _
  %s9 = ssub.s32 1, %s7
  %s10 = scalar_select 0, %s9, %s7
  $region1: #{tpu_custom_call.1} parent=0
    #allocation2 [shape = 'u8[32768]{0}', space=vmem, size = 0x8000, scoped, tag = 'input window, operand 0']
    #allocation3 [shape = 's32[2]{0}', space=sflag, size = 0x8, scoped, tag = 'scoped memory for tpu_custom_call.1']
    #allocation4 [shape = 's32[2]{0}', space=sflag, size = 0x8, scoped, tag = 'scoped memory for tpu_custom_call.1']
    #allocation5 [shape = 'u8[8192]{0}', space=vmem, size = 0x2000, scoped, tag = 'input window, operand 1']
    #allocation6 [shape = 's32[2]{0}', space=sflag, size = 0x8, scoped, tag = 'scoped memory for tpu_custom_call.1']
    #allocation7 [shape = 'u8[24576]{0}', space=vmem, size = 0x6000, scoped, tag = 'input window, operand 2, single buffered']
    #allocation8 [shape = 'u8[32768]{0}', space=vmem, size = 0x8000, scoped, tag = 'input window, operand 4, single buffered']
    #allocation9 [shape = 's32[1]{0}', space=sflag, size = 0x4, scoped, tag = 'scoped memory for tpu_custom_call.1']
    #allocation10 [shape = 'u8[32768]{0}', space=vmem, size = 0x8000, scoped, tag = 'input window, operand 5, single buffered']
    #allocation11 [shape = 'u8[32768]{0}', space=vmem, size = 0x8000, scoped, tag = 'output window, operand 0']
    %11 = vsyncpa [#allocation3], 0
    %s12 = scalar_lea.sflag [#allocation3], 1
    %13 = vsyncpa %s12, 0
    %14 = vsyncpa [#allocation6], 0
    %s15 = scalar_lea.sflag [#allocation6], 1
    %16 = vsyncpa %s15, 0
    %17 = vsyncpa [#allocation9], 0
    %18 = vsyncpa [#allocation4], 0
    %s19 = scalar_lea.sflag [#allocation4], 1
    %20 = vsyncpa %s19, 0
    loop: start=0, step=1, limit=6
    $region2: #{tpu_custom_call.1} parent=1 // loop_pre_header
      _
    $region3: #{tpu_custom_call.1} parent=1 // loop_header
      %s22 = sphi 0, %s26
      %p23 = scmp.ge.s32.totalorder %s22, 6
      %s29 = sphi 0, %s41
      %s30 = sphi 0, %s37
      %s31 = sphi 0, %s29
      %s32 = sphi 0, %s30
      %s33 = sphi 0, %s31
      %s34 = sphi 0, %s32
      %s46 = sphi 0, %s48
      %s49 = sphi 0, %s46
      %s50 = sphi 0, %s49
      %s66 = sphi 0, %s50
      %s78 = sphi 0, %s80
      %s81 = sphi 0, %s78
      %s82 = sphi 0, %s81
      %s98 = sphi 0, %s82
      %s102 = sphi 0, %s102
      %s104 = sphi 0, %s102
      %s105 = sphi 0, %s104
      %s119 = sphi 0, %s105
      %s123 = sphi 0, %s123
      %s125 = sphi 0, %s123
      %s126 = sphi 0, %s125
      %s140 = sphi 0, %s126
      %s144 = sphi 0, %s144
      %s146 = sphi 0, %s144
      %s147 = sphi 0, %s146
      %s161 = sphi 0, %s147
      %s165 = sphi 0, %s165
      %s167 = sphi 0, %s165
      %s168 = sphi 0, %s167
      %s182 = sphi 0, %s168
      %s190 = sphi 0, %s192
      %s193 = sphi 0, %s190
      %s194 = sphi 0, %s193
      %s210 = sphi 0, %s194
    $region4: #{tpu_custom_call.1} parent=1 // loop_header_branch
      %25 = sbr.rel (%p23) target = $region8
    $region5: #{tpu_custom_call.1} parent=1 // loop_body
      %s27 = ssub.s32 %s22, 1
      %s28 = ssub.s32 %s22, 2
      %s35 = sadd.s32 1, %s30
      %p36 = scmp.ge.s32.totalorder %s35, 2
      %s37 = scalar_select %p36, 0, %s35
      %s38 = sadd.s32 1, %s29
      %s39 = scalar_select %p36, %s38, %s29
      %p40 = scmp.ge.s32.totalorder %s39, 2
      %s41 = scalar_select %p40, 0, %s39
      %s42 = ssub.s32 %s29, %s41
      %s43 = ssub.s32 %s30, %s37
      %s44 = sor.u32 %s42, %s43
      %p45 = scmp.eq.s32.totalorder %s44, 0
      %s47 = sadd.s32 %s46, 1
      %s48 = scalar_select %p45, %s46, %s47
      %p51 = pneg %p45
      %p52 = scmp.eq.s32.totalorder %s22, 3
      %p53 = por %p51, %p52
      %p54 = scmp.ne.s32.totalorder %s46, %s49
      %p55 = scmp.eq.s32.totalorder %s22, 0
      %p56 = por %p54, %p55
      %p57 = scmp.ne.s32.totalorder %s46, %s49
      %p58 = scmp.eq.s32.totalorder %s27, 3
      %p59 = por %p57, %p58
      %p60 = scmp.ne.s32.totalorder %s49, %s50
      %p61 = scmp.eq.s32.totalorder %s27, 0
      %p62 = por %p60, %p61
      %p63 = scmp.ne.s32.totalorder %s49, %s50
      %p64 = scmp.eq.s32.totalorder %s28, 3
      %p65 = por %p63, %p64
      %p67 = scmp.ne.s32.totalorder %s50, %s66
      %p68 = scmp.eq.s32.totalorder %s28, 0
      %p69 = por %p67, %p68
      %s70 = sadd.s32 %s30, 1
      %s71 = smul.u32 %s70, 4
      %s72 = sadd.s32 %s37, 1
      %s73 = smul.u32 %s72, 4
      %s74 = ssub.s32 %s29, %s41
      %s75 = ssub.s32 %s71, %s73
      %s76 = sor.u32 %s74, %s75
      %p77 = scmp.eq.s32.totalorder %s76, 0
      %s79 = sadd.s32 %s78, 1
      %s80 = scalar_select %p77, %s78, %s79
      %p83 = pneg %p77
      %p84 = scmp.eq.s32.totalorder %s22, 3
      %p85 = por %p83, %p84
      %p86 = scmp.ne.s32.totalorder %s78, %s81
      %p87 = scmp.eq.s32.totalorder %s22, 0
      %p88 = por %p86, %p87
      %p89 = scmp.ne.s32.totalorder %s78, %s81
      %p90 = scmp.eq.s32.totalorder %s27, 3
      %p91 = por %p89, %p90
      %p92 = scmp.ne.s32.totalorder %s81, %s82
      %p93 = scmp.eq.s32.totalorder %s27, 0
      %p94 = por %p92, %p93
      %p95 = scmp.ne.s32.totalorder %s81, %s82
      %p96 = scmp.eq.s32.totalorder %s28, 3
      %p97 = por %p95, %p96
      %p99 = scmp.ne.s32.totalorder %s82, %s98
      %p100 = scmp.eq.s32.totalorder %s28, 0
      %p101 = por %p99, %p100
      %s103 = sadd.s32 %s102, 1
      %p106 = scmp.eq.s32.totalorder %s22, 3
      %p107 = scmp.ne.s32.totalorder %s102, %s104
      %p108 = scmp.eq.s32.totalorder %s22, 0
      %p109 = por %p107, %p108
      %p110 = scmp.ne.s32.totalorder %s102, %s104
      %p111 = scmp.eq.s32.totalorder %s27, 3
      %p112 = por %p110, %p111
      %p113 = scmp.ne.s32.totalorder %s104, %s105
      %p114 = scmp.eq.s32.totalorder %s27, 0
      %p115 = por %p113, %p114
      %p116 = scmp.ne.s32.totalorder %s104, %s105
      %p117 = scmp.eq.s32.totalorder %s28, 3
      %p118 = por %p116, %p117
      %p120 = scmp.ne.s32.totalorder %s105, %s119
      %p121 = scmp.eq.s32.totalorder %s28, 0
      %p122 = por %p120, %p121
      %s124 = sadd.s32 %s123, 1
      %p127 = scmp.eq.s32.totalorder %s22, 3
      %p128 = scmp.ne.s32.totalorder %s123, %s125
      %p129 = scmp.eq.s32.totalorder %s22, 0
      %p130 = por %p128, %p129
      %p131 = scmp.ne.s32.totalorder %s123, %s125
      %p132 = scmp.eq.s32.totalorder %s27, 3
      %p133 = por %p131, %p132
      %p134 = scmp.ne.s32.totalorder %s125, %s126
      %p135 = scmp.eq.s32.totalorder %s27, 0
      %p136 = por %p134, %p135
      %p137 = scmp.ne.s32.totalorder %s125, %s126
      %p138 = scmp.eq.s32.totalorder %s28, 3
      %p139 = por %p137, %p138
      %p141 = scmp.ne.s32.totalorder %s126, %s140
      %p142 = scmp.eq.s32.totalorder %s28, 0
      %p143 = por %p141, %p142
      %s145 = sadd.s32 %s144, 1
      %p148 = scmp.eq.s32.totalorder %s22, 3
      %p149 = scmp.ne.s32.totalorder %s144, %s146
      %p150 = scmp.eq.s32.totalorder %s22, 0
      %p151 = por %p149, %p150
      %p152 = scmp.ne.s32.totalorder %s144, %s146
      %p153 = scmp.eq.s32.totalorder %s27, 3
      %p154 = por %p152, %p153
      %p155 = scmp.ne.s32.totalorder %s146, %s147
      %p156 = scmp.eq.s32.totalorder %s27, 0
      %p157 = por %p155, %p156
      %p158 = scmp.ne.s32.totalorder %s146, %s147
      %p159 = scmp.eq.s32.totalorder %s28, 3
      %p160 = por %p158, %p159
      %p162 = scmp.ne.s32.totalorder %s147, %s161
      %p163 = scmp.eq.s32.totalorder %s28, 0
      %p164 = por %p162, %p163
      %s166 = sadd.s32 %s165, 1
      %p169 = scmp.eq.s32.totalorder %s22, 3
      %p170 = scmp.ne.s32.totalorder %s165, %s167
      %p171 = scmp.eq.s32.totalorder %s22, 0
      %p172 = por %p170, %p171
      %p173 = scmp.ne.s32.totalorder %s165, %s167
      %p174 = scmp.eq.s32.totalorder %s27, 3
      %p175 = por %p173, %p174
      %p176 = scmp.ne.s32.totalorder %s167, %s168
      %p177 = scmp.eq.s32.totalorder %s27, 0
      %p178 = por %p176, %p177
      %p179 = scmp.ne.s32.totalorder %s167, %s168
      %p180 = scmp.eq.s32.totalorder %s28, 3
      %p181 = por %p179, %p180
      %p183 = scmp.ne.s32.totalorder %s168, %s182
      %p184 = scmp.eq.s32.totalorder %s28, 0
      %p185 = por %p183, %p184
      %s186 = ssub.s32 %s29, %s41
      %s187 = ssub.s32 %s30, %s37
      %s188 = sor.u32 %s186, %s187
      %p189 = scmp.eq.s32.totalorder %s188, 0
      %s191 = sadd.s32 %s190, 1
      %s192 = scalar_select %p189, %s190, %s191
      %p195 = pneg %p189
      %p196 = scmp.eq.s32.totalorder %s22, 3
      %p197 = por %p195, %p196
      %p198 = scmp.ne.s32.totalorder %s190, %s193
      %p199 = scmp.eq.s32.totalorder %s22, 0
      %p200 = por %p198, %p199
      %p201 = scmp.ne.s32.totalorder %s190, %s193
      %p202 = scmp.eq.s32.totalorder %s27, 3
      %p203 = por %p201, %p202
      %p204 = scmp.ne.s32.totalorder %s193, %s194
      %p205 = scmp.eq.s32.totalorder %s27, 0
      %p206 = por %p204, %p205
      %p207 = scmp.ne.s32.totalorder %s193, %s194
      %p208 = scmp.eq.s32.totalorder %s28, 3
      %p209 = por %p207, %p208
      %p211 = scmp.ne.s32.totalorder %s194, %s210
      %p212 = scmp.eq.s32.totalorder %s28, 0
      %p213 = por %p211, %p212
      %p214 = scmp.le.s32.totalorder 1, %s22
      %p215 = scmp.lt.s32.totalorder %s22, 5
      %p216 = pnand %p214, %p215
      %p217 = pneg %p216
      // Predicated region
      $region9: #{tpu_custom_call.1} parent=5 // pred_check
        _
      $region10: #{tpu_custom_call.1} parent=5 // pred_check_branch
        %219 = sbr.rel (%p216) target = $region12
      $region11: #{tpu_custom_call.1} parent=5 // pred_region
        %s220 = ssub.s32 %s22, 1
        // Predicated region
        $region13: #{tpu_custom_call.1} parent=11 // pred_check
          %p221 = pneg %p115
        $region14: #{tpu_custom_call.1} parent=11 // pred_check_branch
          %223 = sbr.rel (%p221) target = $region16
        $region15: #{tpu_custom_call.1} parent=11 // pred_region
          %s225 = ssub.s32 768, 768
          %226 = vsyncadd [#allocation6], %s225
          %s227 = sshll.u32 [#allocation7], 4
          %s228 = int_to_ptr.vmem [resolvable:$true] %s227
          %233 = dma.hbm_to_vmem [thread:$0]  %s2, 768, %s228, [#allocation6], 128, 128, 8
        $region16: #{tpu_custom_call.1} parent=11 // pred_fallthru
          _
        // Predicated region
        $region17: #{tpu_custom_call.1} parent=11 // pred_check
          %p234 = pneg %p136
        $region18: #{tpu_custom_call.1} parent=11 // pred_check_branch
          %236 = sbr.rel (%p234) target = $region20
        $region19: #{tpu_custom_call.1} parent=11 // pred_region
          _
        $region20: #{tpu_custom_call.1} parent=11 // pred_fallthru
          _
        // Predicated region
        $region21: #{tpu_custom_call.1} parent=11 // pred_check
          %p237 = pneg %p157
        $region22: #{tpu_custom_call.1} parent=11 // pred_check_branch
          %239 = sbr.rel (%p237) target = $region24
        $region23: #{tpu_custom_call.1} parent=11 // pred_region
          %s241 = ssub.s32 1024, 1024
          %242 = vsyncadd [#allocation9], %s241
          %s243 = sshll.u32 [#allocation8], 4
          %s244 = int_to_ptr.vmem [resolvable:$true] %s243
          %249 = dma.hbm_to_vmem [thread:$0]  %s4, 1024, %s244, [#allocation9], 64, 64, 4
        $region24: #{tpu_custom_call.1} parent=11 // pred_fallthru
          _
        // Predicated region
        $region25: #{tpu_custom_call.1} parent=11 // pred_check
          %p250 = pneg %p178
        $region26: #{tpu_custom_call.1} parent=11 // pred_check_branch
          %252 = sbr.rel (%p250) target = $region28
        $region27: #{tpu_custom_call.1} parent=11 // pred_region
          %s254 = ssub.s32 1024, 1024
          %255 = vsyncadd [#allocation9], %s254
          %s256 = sshll.u32 [#allocation10], 4
          %s257 = int_to_ptr.vmem [resolvable:$true] %s256
          %262 = dma.hbm_to_vmem [thread:$0]  %s5, 1024, %s257, [#allocation9], 64, 64, 4
        $region28: #{tpu_custom_call.1} parent=11 // pred_fallthru
          _
      $region12: #{tpu_custom_call.1} parent=5 // pred_fallthru
        _
      %p263 = scmp.lt.s32.totalorder %s22, 4
      // Predicated region
      $region29: #{tpu_custom_call.1} parent=5 // pred_check
        %p264 = pneg %p263
      $region30: #{tpu_custom_call.1} parent=5 // pred_check_branch
        %266 = sbr.rel (%p264) target = $region32
      $region31: #{tpu_custom_call.1} parent=5 // pred_region
        // Predicated region
        $region33: #{tpu_custom_call.1} parent=31 // pred_check
          %p267 = pneg %p56
        $region34: #{tpu_custom_call.1} parent=31 // pred_check_branch
          %269 = sbr.rel (%p267) target = $region36
        $region35: #{tpu_custom_call.1} parent=31 // pred_region
          %s270 = sand.u32 %s46, 1
          %s271 = scalar_lea.sflag [#allocation3], %s270
          %s272 = sand.u32 %s46, 1
          %s273 = smul.addr %s272, 32
          %s274 = scalar_lea.vmem [#allocation2], %s273
          %s275 = smul.u32 4, %s30
          %s277 = ssub.s32 512, 512
          %278 = vsyncadd %s271, %s277
          %s279 = smul.addr %s29, 12
          %s280 = sadd.s32 %s275, %s279
          %s281 = smul.addr %s280, 128
          %s282 = scalar_lea.hbm %s0, %s281
          %s283 = sshll.u32 %s274, 4
          %s284 = int_to_ptr.vmem [resolvable:$true] %s283
          %289 = dma.hbm_to_vmem [thread:$0]  %s282, 512, %s284, %s271, 128, 128, 8
        $region36: #{tpu_custom_call.1} parent=31 // pred_fallthru
          _
        // Predicated region
        $region37: #{tpu_custom_call.1} parent=31 // pred_check
          %p290 = pneg %p88
        $region38: #{tpu_custom_call.1} parent=31 // pred_check_branch
          %292 = sbr.rel (%p290) target = $region40
        $region39: #{tpu_custom_call.1} parent=31 // pred_region
          %s293 = sand.u32 %s22, 1
          %s294 = scalar_lea.sflag [#allocation6], %s293
          %s295 = sand.u32 %s78, 1
          %s296 = smul.addr %s295, 8
          %s297 = scalar_lea.vmem [#allocation5], %s296
          %s298 = sadd.s32 %s30, 1
          %s299 = smul.u32 %s298, 4
          %s301 = ssub.s32 128, 128
          %302 = vsyncadd %s294, %s301
          %s303 = smul.addr %s29, 12
          %s304 = sadd.s32 %s299, %s303
          %s305 = smul.addr %s304, 128
          %s306 = scalar_lea.hbm %s1, %s305
          %s308 = sshll.u32 %s297, 4
          %s309 = int_to_ptr.vmem [resolvable:$true] %s308
          %311 = dma.hbm_to_vmem [thread:$0]  %s306, 128, %s309, %s294
        $region40: #{tpu_custom_call.1} parent=31 // pred_fallthru
          _
      $region32: #{tpu_custom_call.1} parent=5 // pred_fallthru
        _
      %p312 = scmp.le.s32.totalorder 1, %s22
      %p313 = scmp.lt.s32.totalorder %s22, 5
      %p314 = pnand %p312, %p313
      %p315 = pneg %p314
      // Predicated region
      $region41: #{tpu_custom_call.1} parent=5 // pred_check
        _
      $region42: #{tpu_custom_call.1} parent=5 // pred_check_branch
        %317 = sbr.rel (%p314) target = $region44
      $region43: #{tpu_custom_call.1} parent=5 // pred_region
        %s318 = ssub.s32 %s22, 1
        %s319 = sand.u32 %s49, 1
        %s320 = scalar_lea.sflag [#allocation3], %s319
        %s321 = sand.u32 %s49, 1
        %s322 = smul.addr %s321, 32
        %s323 = scalar_lea.vmem [#allocation2], %s322
        // Predicated region
        $region45: #{tpu_custom_call.1} parent=43 // pred_check
          %p324 = pneg %p62
        $region46: #{tpu_custom_call.1} parent=43 // pred_check_branch
          %326 = sbr.rel (%p324) target = $region48
        $region47: #{tpu_custom_call.1} parent=43 // pred_region
          %327 = dma.done %s320, 512
        $region48: #{tpu_custom_call.1} parent=43 // pred_fallthru
          _
        %s328 = sand.u32 %s27, 1
        %s329 = scalar_lea.sflag [#allocation6], %s328
        %s330 = sand.u32 %s81, 1
        %s331 = smul.addr %s330, 8
        %s332 = scalar_lea.vmem [#allocation5], %s331
        // Predicated region
        $region49: #{tpu_custom_call.1} parent=43 // pred_check
          %p333 = pneg %p94
        $region50: #{tpu_custom_call.1} parent=43 // pred_check_branch
          %335 = sbr.rel (%p333) target = $region52
        $region51: #{tpu_custom_call.1} parent=43 // pred_region
          %336 = dma.done %s329, 128
        $region52: #{tpu_custom_call.1} parent=43 // pred_fallthru
          _
        // Predicated region
        $region53: #{tpu_custom_call.1} parent=43 // pred_check
          %p337 = pneg %p115
        $region54: #{tpu_custom_call.1} parent=43 // pred_check_branch
          %339 = sbr.rel (%p337) target = $region56
        $region55: #{tpu_custom_call.1} parent=43 // pred_region
          %340 = dma.done [#allocation6], 768
        $region56: #{tpu_custom_call.1} parent=43 // pred_fallthru
          _
        // Predicated region
        $region57: #{tpu_custom_call.1} parent=43 // pred_check
          %p341 = pneg %p157
        $region58: #{tpu_custom_call.1} parent=43 // pred_check_branch
          %343 = sbr.rel (%p341) target = $region60
        $region59: #{tpu_custom_call.1} parent=43 // pred_region
          %344 = dma.done [#allocation9], 1024
        $region60: #{tpu_custom_call.1} parent=43 // pred_fallthru
          _
        // Predicated region
        $region61: #{tpu_custom_call.1} parent=43 // pred_check
          %p345 = pneg %p178
        $region62: #{tpu_custom_call.1} parent=43 // pred_check_branch
          %347 = sbr.rel (%p345) target = $region64
        $region63: #{tpu_custom_call.1} parent=43 // pred_region
          %348 = dma.done [#allocation9], 1024
        $region64: #{tpu_custom_call.1} parent=43 // pred_fallthru
          _
        %s349 = sand.u32 %s49, 1
        %s350 = scalar_lea.sflag [#allocation3], %s349
        %s351 = sand.u32 %s49, 1
        %s352 = smul.addr %s351, 32
        %s353 = scalar_lea.vmem [#allocation2], %s352
        %p354 = pneg %p62
        %p355 = pneg %p59
        %s356 = sand.u32 %s27, 1
        %s357 = scalar_lea.sflag [#allocation6], %s356
        %s358 = sand.u32 %s81, 1
        %s359 = smul.addr %s358, 8
        %s360 = scalar_lea.vmem [#allocation5], %s359
        %p361 = pneg %p94
        %p362 = pneg %p91
        %p363 = pneg %p115
        %p364 = pneg %p112
        %p365 = pneg %p136
        %p366 = pneg %p133
        %p367 = pneg %p157
        %p368 = pneg %p154
        %p369 = pneg %p178
        %p370 = pneg %p175
        %p371 = pneg %p206
        %p372 = pneg %p203
        %s373 = sand.u32 %s193, 1
        %s374 = scalar_lea.sflag [#allocation4], %s373
        %s375 = sand.u32 %s193, 1
        %s376 = smul.addr %s375, 32
        %s377 = scalar_lea.vmem [#allocation11], %s376
        %s378 = smul.u32 4, %s32
        %s379 = sadd.s32 %s32, 1
        %s380 = smul.u32 %s379, 4
        %s381 = smul.u32 4, %s32
        %v383 = vld [vmem:[%s323] sm:$0xff]
        %v384 = vld [vmem:[%s323 + $0x8] sm:$0xff]
        %v385 = vld [vmem:[%s323 + $0x10] sm:$0xff]
        %v386 = vld [vmem:[%s323 + $0x18] sm:$0xff]
        %v387 = vld [vmem:[%s332] sm:$0xff]
        %388 = vrot.lane.b32.xlu0 %v383, 7
        %v389 = vpop.permute.xlu0 %388
        %390 = vrot.lane.b32.xlu0 %v384, 7
        %v391 = vpop.permute.xlu0 %390
        %392 = vrot.lane.b32.xlu0 %v385, 7
        %v393 = vpop.permute.xlu0 %392
        %394 = vrot.lane.b32.xlu0 %v386, 7
        %v395 = vpop.permute.xlu0 %394
        %396 = vrot.lane.b32.xlu0 %v387, 7
        %v397 = vpop.permute.xlu0 %396
        %v398 = vld [vmem:[#allocation7] sm:$0x1]
        %v399 = vlaneseq
        %v400 = vshrl.u32 %v399, 7
        %v401 = vsub.s32 0, %v400
        %v402 = vrot.slane %v398, %v401
        %v403 = vmul.f32 %v402, %v389
        %v404 = vmul.f32 %v402, %v391
        %v405 = vmul.f32 %v402, %v393
        %v406 = vmul.f32 %v402, %v395
        %v407 = vadd.f32 %v403, 0.0
        %v408 = vadd.f32 %v404, 0.0
        %v409 = vadd.f32 %v405, 0.0
        %v410 = vadd.f32 %v406, 0.0
        %v411 = vld [vmem:[#allocation7 + $0x1] sm:$0x1]
        %v412 = vlaneseq
        %v413 = vshrl.u32 %v412, 7
        %v414 = vsub.s32 0, %v413
        %v415 = vrot.slane %v411, %v414
        %v416 = vmul.f32 %v415, %v389
        %v417 = vmul.f32 %v415, %v391
        %v418 = vmul.f32 %v415, %v393
        %v419 = vmul.f32 %v415, %v395
        %v420 = vmul.f32 %v415, %v397
        %vm426 = vcmask 1046528
        %v427 = vrot.slane %v416, 1
        %v428 = vrot.slane %v417, 1
        %v429 = vsel %vm426, %v427, %v428
        %v430 = vrot.slane %v418, 1
        %v431 = vsel %vm426, %v428, %v430
        %v432 = vrot.slane %v419, 1
        %v433 = vsel %vm426, %v430, %v432
        %v434 = vrot.slane %v420, 1
        %v435 = vsel %vm426, %v432, %v434
        %v440 = vadd.f32 %v407, %v429
        %v441 = vadd.f32 %v408, %v431
        %v442 = vadd.f32 %v409, %v433
        %v443 = vadd.f32 %v410, %v435
        %v444 = vld [vmem:[#allocation7 + $0x2] sm:$0x1]
        %v445 = vlaneseq
        %v446 = vshrl.u32 %v445, 7
        %v447 = vsub.s32 0, %v446
        %v448 = vrot.slane %v444, %v447
        %v449 = vmul.f32 %v448, %v389
        %v450 = vmul.f32 %v448, %v391
        %v451 = vmul.f32 %v448, %v393
        %v452 = vmul.f32 %v448, %v395
        %v453 = vmul.f32 %v448, %v397
        %vm459 = vcmask 1045504
        %v460 = vrot.slane %v449, 2
        %v461 = vrot.slane %v450, 2
        %v462 = vsel %vm459, %v460, %v461
        %v463 = vrot.slane %v451, 2
        %v464 = vsel %vm459, %v461, %v463
        %v465 = vrot.slane %v452, 2
        %v466 = vsel %vm459, %v463, %v465
        %v467 = vrot.slane %v453, 2
        %v468 = vsel %vm459, %v465, %v467
        %v473 = vadd.f32 %v440, %v462
        %v474 = vadd.f32 %v441, %v464
        %v475 = vadd.f32 %v442, %v466
        %v476 = vadd.f32 %v443, %v468
        %477 = vrot.lane.b32.xlu0 %v383, 6
        %v478 = vpop.permute.xlu0 %477
        %479 = vrot.lane.b32.xlu0 %v384, 6
        %v480 = vpop.permute.xlu0 %479
        %481 = vrot.lane.b32.xlu0 %v385, 6
        %v482 = vpop.permute.xlu0 %481
        %483 = vrot.lane.b32.xlu0 %v386, 6
        %v484 = vpop.permute.xlu0 %483
        %485 = vrot.lane.b32.xlu0 %v387, 6
        %v486 = vpop.permute.xlu0 %485
        %v487 = vld [vmem:[#allocation7 + $0x3] sm:$0x1]
        %v488 = vlaneseq
        %v489 = vshrl.u32 %v488, 7
        %v490 = vsub.s32 0, %v489
        %v491 = vrot.slane %v487, %v490
        %v492 = vmul.f32 %v491, %v478
        %v493 = vmul.f32 %v491, %v480
        %v494 = vmul.f32 %v491, %v482
        %v495 = vmul.f32 %v491, %v484
        %v496 = vadd.f32 %v473, %v492
        %v497 = vadd.f32 %v474, %v493
        %v498 = vadd.f32 %v475, %v494
        %v499 = vadd.f32 %v476, %v495
        %v500 = vld [vmem:[#allocation7 + $0x4] sm:$0x1]
        %v501 = vlaneseq
        %v502 = vshrl.u32 %v501, 7
        %v503 = vsub.s32 0, %v502
        %v504 = vrot.slane %v500, %v503
        %v505 = vmul.f32 %v504, %v478
        %v506 = vmul.f32 %v504, %v480
        %v507 = vmul.f32 %v504, %v482
        %v508 = vmul.f32 %v504, %v484
        %v509 = vmul.f32 %v504, %v486
        %v515 = vrot.slane %v505, 1
        %v516 = vrot.slane %v506, 1
        %v517 = vsel %vm426, %v515, %v516
        %v518 = vrot.slane %v507, 1
        %v519 = vsel %vm426, %v516, %v518
        %v520 = vrot.slane %v508, 1
        %v521 = vsel %vm426, %v518, %v520
        %v522 = vrot.slane %v509, 1
        %v523 = vsel %vm426, %v520, %v522
        %v528 = vadd.f32 %v496, %v517
        %v529 = vadd.f32 %v497, %v519
        %v530 = vadd.f32 %v498, %v521
        %v531 = vadd.f32 %v499, %v523
        %v532 = vld [vmem:[#allocation7 + $0x5] sm:$0x1]
        %v533 = vlaneseq
        %v534 = vshrl.u32 %v533, 7
        %v535 = vsub.s32 0, %v534
        %v536 = vrot.slane %v532, %v535
        %v537 = vmul.f32 %v536, %v478
        %v538 = vmul.f32 %v536, %v480
        %v539 = vmul.f32 %v536, %v482
        %v540 = vmul.f32 %v536, %v484
        %v541 = vmul.f32 %v536, %v486
        %v547 = vrot.slane %v537, 2
        %v548 = vrot.slane %v538, 2
        %v549 = vsel %vm459, %v547, %v548
        %v550 = vrot.slane %v539, 2
        %v551 = vsel %vm459, %v548, %v550
        %v552 = vrot.slane %v540, 2
        %v553 = vsel %vm459, %v550, %v552
        %v554 = vrot.slane %v541, 2
        %v555 = vsel %vm459, %v552, %v554
        %v560 = vadd.f32 %v528, %v549
        %v561 = vadd.f32 %v529, %v551
        %v562 = vadd.f32 %v530, %v553
        %v563 = vadd.f32 %v531, %v555
        %564 = vrot.lane.b32.xlu0 %v383, 5
        %v565 = vpop.permute.xlu0 %564
        %566 = vrot.lane.b32.xlu0 %v384, 5
        %v567 = vpop.permute.xlu0 %566
        %568 = vrot.lane.b32.xlu0 %v385, 5
        %v569 = vpop.permute.xlu0 %568
        %570 = vrot.lane.b32.xlu0 %v386, 5
        %v571 = vpop.permute.xlu0 %570
        %572 = vrot.lane.b32.xlu0 %v387, 5
        %v573 = vpop.permute.xlu0 %572
        %v574 = vld [vmem:[#allocation7 + $0x6] sm:$0x1]
        %v575 = vlaneseq
        %v576 = vshrl.u32 %v575, 7
        %v577 = vsub.s32 0, %v576
        %v578 = vrot.slane %v574, %v577
        %v579 = vmul.f32 %v578, %v565
        %v580 = vmul.f32 %v578, %v567
        %v581 = vmul.f32 %v578, %v569
        %v582 = vmul.f32 %v578, %v571
        %v583 = vadd.f32 %v560, %v579
        %v584 = vadd.f32 %v561, %v580
        %v585 = vadd.f32 %v562, %v581
        %v586 = vadd.f32 %v563, %v582
        %v587 = vld [vmem:[#allocation7 + $0x7] sm:$0x1]
        %v588 = vlaneseq
        %v589 = vshrl.u32 %v588, 7
        %v590 = vsub.s32 0, %v589
        %v591 = vrot.slane %v587, %v590
        %v592 = vmul.f32 %v591, %v565
        %v593 = vmul.f32 %v591, %v567
        %v594 = vmul.f32 %v591, %v569
        %v595 = vmul.f32 %v591, %v571
        %v596 = vmul.f32 %v591, %v573
        %v602 = vrot.slane %v592, 1
        %v603 = vrot.slane %v593, 1
        %v604 = vsel %vm426, %v602, %v603
        %v605 = vrot.slane %v594, 1
        %v606 = vsel %vm426, %v603, %v605
        %v607 = vrot.slane %v595, 1
        %v608 = vsel %vm426, %v605, %v607
        %v609 = vrot.slane %v596, 1
        %v610 = vsel %vm426, %v607, %v609
        %v615 = vadd.f32 %v583, %v604
        %v616 = vadd.f32 %v584, %v606
        %v617 = vadd.f32 %v585, %v608
        %v618 = vadd.f32 %v586, %v610
        %v619 = vld [vmem:[#allocation7 + $0x8] sm:$0x1]
        %v620 = vlaneseq
        %v621 = vshrl.u32 %v620, 7
        %v622 = vsub.s32 0, %v621
        %v623 = vrot.slane %v619, %v622
        %v624 = vmul.f32 %v623, %v565
        %v625 = vmul.f32 %v623, %v567
        %v626 = vmul.f32 %v623, %v569
        %v627 = vmul.f32 %v623, %v571
        %v628 = vmul.f32 %v623, %v573
        %v634 = vrot.slane %v624, 2
        %v635 = vrot.slane %v625, 2
        %v636 = vsel %vm459, %v634, %v635
        %v637 = vrot.slane %v626, 2
        %v638 = vsel %vm459, %v635, %v637
        %v639 = vrot.slane %v627, 2
        %v640 = vsel %vm459, %v637, %v639
        %v641 = vrot.slane %v628, 2
        %v642 = vsel %vm459, %v639, %v641
        %v647 = vadd.f32 %v615, %v636
        %v648 = vadd.f32 %v616, %v638
        %v649 = vadd.f32 %v617, %v640
        %v650 = vadd.f32 %v618, %v642
        %651 = vrot.lane.b32.xlu0 %v383, 4
        %v652 = vpop.permute.xlu0 %651
        %653 = vrot.lane.b32.xlu0 %v384, 4
        %v654 = vpop.permute.xlu0 %653
        %655 = vrot.lane.b32.xlu0 %v385, 4
        %v656 = vpop.permute.xlu0 %655
        %657 = vrot.lane.b32.xlu0 %v386, 4
        %v658 = vpop.permute.xlu0 %657
        %659 = vrot.lane.b32.xlu0 %v387, 4
        %v660 = vpop.permute.xlu0 %659
        %v661 = vld [vmem:[#allocation7 + $0x9] sm:$0x1]
        %v662 = vlaneseq
        %v663 = vshrl.u32 %v662, 7
        %v664 = vsub.s32 0, %v663
        %v665 = vrot.slane %v661, %v664
        %v666 = vmul.f32 %v665, %v652
        %v667 = vmul.f32 %v665, %v654
        %v668 = vmul.f32 %v665, %v656
        %v669 = vmul.f32 %v665, %v658
        %v670 = vadd.f32 %v647, %v666
        %v671 = vadd.f32 %v648, %v667
        %v672 = vadd.f32 %v649, %v668
        %v673 = vadd.f32 %v650, %v669
        %v674 = vld [vmem:[#allocation7 + $0xa] sm:$0x1]
        %v675 = vlaneseq
        %v676 = vshrl.u32 %v675, 7
        %v677 = vsub.s32 0, %v676
        %v678 = vrot.slane %v674, %v677
        %v679 = vmul.f32 %v678, %v652
        %v680 = vmul.f32 %v678, %v654
        %v681 = vmul.f32 %v678, %v656
        %v682 = vmul.f32 %v678, %v658
        %v683 = vmul.f32 %v678, %v660
        %v689 = vrot.slane %v679, 1
        %v690 = vrot.slane %v680, 1
        %v691 = vsel %vm426, %v689, %v690
        %v692 = vrot.slane %v681, 1
        %v693 = vsel %vm426, %v690, %v692
        %v694 = vrot.slane %v682, 1
        %v695 = vsel %vm426, %v692, %v694
        %v696 = vrot.slane %v683, 1
        %v697 = vsel %vm426, %v694, %v696
        %v702 = vadd.f32 %v670, %v691
        %v703 = vadd.f32 %v671, %v693
        %v704 = vadd.f32 %v672, %v695
        %v705 = vadd.f32 %v673, %v697
        %v706 = vld [vmem:[#allocation7 + $0xb] sm:$0x1]
        %v707 = vlaneseq
        %v708 = vshrl.u32 %v707, 7
        %v709 = vsub.s32 0, %v708
        %v710 = vrot.slane %v706, %v709
        %v711 = vmul.f32 %v710, %v652
        %v712 = vmul.f32 %v710, %v654
        %v713 = vmul.f32 %v710, %v656
        %v714 = vmul.f32 %v710, %v658
        %v715 = vmul.f32 %v710, %v660
        %v721 = vrot.slane %v711, 2
        %v722 = vrot.slane %v712, 2
        %v723 = vsel %vm459, %v721, %v722
        %v724 = vrot.slane %v713, 2
        %v725 = vsel %vm459, %v722, %v724
        %v726 = vrot.slane %v714, 2
        %v727 = vsel %vm459, %v724, %v726
        %v728 = vrot.slane %v715, 2
        %v729 = vsel %vm459, %v726, %v728
        %v734 = vadd.f32 %v702, %v723
        %v735 = vadd.f32 %v703, %v725
        %v736 = vadd.f32 %v704, %v727
        %v737 = vadd.f32 %v705, %v729
        %738 = vrot.lane.b32.xlu0 %v383, 3
        %v739 = vpop.permute.xlu0 %738
        %740 = vrot.lane.b32.xlu0 %v384, 3
        %v741 = vpop.permute.xlu0 %740
        %742 = vrot.lane.b32.xlu0 %v385, 3
        %v743 = vpop.permute.xlu0 %742
        %744 = vrot.lane.b32.xlu0 %v386, 3
        %v745 = vpop.permute.xlu0 %744
        %746 = vrot.lane.b32.xlu0 %v387, 3
        %v747 = vpop.permute.xlu0 %746
        %v748 = vld [vmem:[#allocation7 + $0xc] sm:$0x1]
        %v749 = vlaneseq
        %v750 = vshrl.u32 %v749, 7
        %v751 = vsub.s32 0, %v750
        %v752 = vrot.slane %v748, %v751
        %v753 = vmul.f32 %v752, %v739
        %v754 = vmul.f32 %v752, %v741
        %v755 = vmul.f32 %v752, %v743
        %v756 = vmul.f32 %v752, %v745
        %v757 = vadd.f32 %v734, %v753
        %v758 = vadd.f32 %v735, %v754
        %v759 = vadd.f32 %v736, %v755
        %v760 = vadd.f32 %v737, %v756
        %v761 = vld [vmem:[#allocation7 + $0xd] sm:$0x1]
        %v762 = vlaneseq
        %v763 = vshrl.u32 %v762, 7
        %v764 = vsub.s32 0, %v763
        %v765 = vrot.slane %v761, %v764
        %v766 = vmul.f32 %v765, %v739
        %v767 = vmul.f32 %v765, %v741
        %v768 = vmul.f32 %v765, %v743
        %v769 = vmul.f32 %v765, %v745
        %v770 = vmul.f32 %v765, %v747
        %v776 = vrot.slane %v766, 1
        %v777 = vrot.slane %v767, 1
        %v778 = vsel %vm426, %v776, %v777
        %v779 = vrot.slane %v768, 1
        %v780 = vsel %vm426, %v777, %v779
        %v781 = vrot.slane %v769, 1
        %v782 = vsel %vm426, %v779, %v781
        %v783 = vrot.slane %v770, 1
        %v784 = vsel %vm426, %v781, %v783
        %v789 = vadd.f32 %v757, %v778
        %v790 = vadd.f32 %v758, %v780
        %v791 = vadd.f32 %v759, %v782
        %v792 = vadd.f32 %v760, %v784
        %v793 = vld [vmem:[#allocation7 + $0xe] sm:$0x1]
        %v794 = vlaneseq
        %v795 = vshrl.u32 %v794, 7
        %v796 = vsub.s32 0, %v795
        %v797 = vrot.slane %v793, %v796
        %v798 = vmul.f32 %v797, %v739
        %v799 = vmul.f32 %v797, %v741
        %v800 = vmul.f32 %v797, %v743
        %v801 = vmul.f32 %v797, %v745
        %v802 = vmul.f32 %v797, %v747
        %v808 = vrot.slane %v798, 2
        %v809 = vrot.slane %v799, 2
        %v810 = vsel %vm459, %v808, %v809
        %v811 = vrot.slane %v800, 2
        %v812 = vsel %vm459, %v809, %v811
        %v813 = vrot.slane %v801, 2
        %v814 = vsel %vm459, %v811, %v813
        %v815 = vrot.slane %v802, 2
        %v816 = vsel %vm459, %v813, %v815
        %v821 = vadd.f32 %v789, %v810
        %v822 = vadd.f32 %v790, %v812
        %v823 = vadd.f32 %v791, %v814
        %v824 = vadd.f32 %v792, %v816
        %825 = vrot.lane.b32.xlu0 %v383, 2
        %v826 = vpop.permute.xlu0 %825
        %827 = vrot.lane.b32.xlu0 %v384, 2
        %v828 = vpop.permute.xlu0 %827
        %829 = vrot.lane.b32.xlu0 %v385, 2
        %v830 = vpop.permute.xlu0 %829
        %831 = vrot.lane.b32.xlu0 %v386, 2
        %v832 = vpop.permute.xlu0 %831
        %833 = vrot.lane.b32.xlu0 %v387, 2
        %v834 = vpop.permute.xlu0 %833
        %v835 = vld [vmem:[#allocation7 + $0xf] sm:$0x1]
        %v836 = vlaneseq
        %v837 = vshrl.u32 %v836, 7
        %v838 = vsub.s32 0, %v837
        %v839 = vrot.slane %v835, %v838
        %v840 = vmul.f32 %v839, %v826
        %v841 = vmul.f32 %v839, %v828
        %v842 = vmul.f32 %v839, %v830
        %v843 = vmul.f32 %v839, %v832
        %v844 = vadd.f32 %v821, %v840
        %v845 = vadd.f32 %v822, %v841
        %v846 = vadd.f32 %v823, %v842
        %v847 = vadd.f32 %v824, %v843
        %v848 = vld [vmem:[#allocation7 + $0x10] sm:$0x1]
        %v849 = vlaneseq
        %v850 = vshrl.u32 %v849, 7
        %v851 = vsub.s32 0, %v850
        %v852 = vrot.slane %v848, %v851
        %v853 = vmul.f32 %v852, %v826
        %v854 = vmul.f32 %v852, %v828
        %v855 = vmul.f32 %v852, %v830
        %v856 = vmul.f32 %v852, %v832
        %v857 = vmul.f32 %v852, %v834
        %v863 = vrot.slane %v853, 1
        %v864 = vrot.slane %v854, 1
        %v865 = vsel %vm426, %v863, %v864
        %v866 = vrot.slane %v855, 1
        %v867 = vsel %vm426, %v864, %v866
        %v868 = vrot.slane %v856, 1
        %v869 = vsel %vm426, %v866, %v868
        %v870 = vrot.slane %v857, 1
        %v871 = vsel %vm426, %v868, %v870
        %v876 = vadd.f32 %v844, %v865
        %v877 = vadd.f32 %v845, %v867
        %v878 = vadd.f32 %v846, %v869
        %v879 = vadd.f32 %v847, %v871
        %v880 = vld [vmem:[#allocation7 + $0x11] sm:$0x1]
        %v881 = vlaneseq
        %v882 = vshrl.u32 %v881, 7
        %v883 = vsub.s32 0, %v882
        %v884 = vrot.slane %v880, %v883
        %v885 = vmul.f32 %v884, %v826
        %v886 = vmul.f32 %v884, %v828
        %v887 = vmul.f32 %v884, %v830
        %v888 = vmul.f32 %v884, %v832
        %v889 = vmul.f32 %v884, %v834
        %v895 = vrot.slane %v885, 2
        %v896 = vrot.slane %v886, 2
        %v897 = vsel %vm459, %v895, %v896
        %v898 = vrot.slane %v887, 2
        %v899 = vsel %vm459, %v896, %v898
        %v900 = vrot.slane %v888, 2
        %v901 = vsel %vm459, %v898, %v900
        %v902 = vrot.slane %v889, 2
        %v903 = vsel %vm459, %v900, %v902
        %v908 = vadd.f32 %v876, %v897
        %v909 = vadd.f32 %v877, %v899
        %v910 = vadd.f32 %v878, %v901
        %v911 = vadd.f32 %v879, %v903
        %912 = vrot.lane.b32.xlu0 %v383, 1
        %v913 = vpop.permute.xlu0 %912
        %914 = vrot.lane.b32.xlu0 %v384, 1
        %v915 = vpop.permute.xlu0 %914
        %916 = vrot.lane.b32.xlu0 %v385, 1
        %v917 = vpop.permute.xlu0 %916
        %918 = vrot.lane.b32.xlu0 %v386, 1
        %v919 = vpop.permute.xlu0 %918
        %920 = vrot.lane.b32.xlu0 %v387, 1
        %v921 = vpop.permute.xlu0 %920
        %v922 = vld [vmem:[#allocation7 + $0x12] sm:$0x1]
        %v923 = vlaneseq
        %v924 = vshrl.u32 %v923, 7
        %v925 = vsub.s32 0, %v924
        %v926 = vrot.slane %v922, %v925
        %v927 = vmul.f32 %v926, %v913
        %v928 = vmul.f32 %v926, %v915
        %v929 = vmul.f32 %v926, %v917
        %v930 = vmul.f32 %v926, %v919
        %v931 = vadd.f32 %v908, %v927
        %v932 = vadd.f32 %v909, %v928
        %v933 = vadd.f32 %v910, %v929
        %v934 = vadd.f32 %v911, %v930
        %v935 = vld [vmem:[#allocation7 + $0x13] sm:$0x1]
        %v936 = vlaneseq
        %v937 = vshrl.u32 %v936, 7
        %v938 = vsub.s32 0, %v937
        %v939 = vrot.slane %v935, %v938
        %v940 = vmul.f32 %v939, %v913
        %v941 = vmul.f32 %v939, %v915
        %v942 = vmul.f32 %v939, %v917
        %v943 = vmul.f32 %v939, %v919
        %v944 = vmul.f32 %v939, %v921
        %v950 = vrot.slane %v940, 1
        %v951 = vrot.slane %v941, 1
        %v952 = vsel %vm426, %v950, %v951
        %v953 = vrot.slane %v942, 1
        %v954 = vsel %vm426, %v951, %v953
        %v955 = vrot.slane %v943, 1
        %v956 = vsel %vm426, %v953, %v955
        %v957 = vrot.slane %v944, 1
        %v958 = vsel %vm426, %v955, %v957
        %v963 = vadd.f32 %v931, %v952
        %v964 = vadd.f32 %v932, %v954
        %v965 = vadd.f32 %v933, %v956
        %v966 = vadd.f32 %v934, %v958
        %v967 = vld [vmem:[#allocation7 + $0x14] sm:$0x1]
        %v968 = vlaneseq
        %v969 = vshrl.u32 %v968, 7
        %v970 = vsub.s32 0, %v969
        %v971 = vrot.slane %v967, %v970
        %v972 = vmul.f32 %v971, %v913
        %v973 = vmul.f32 %v971, %v915
        %v974 = vmul.f32 %v971, %v917
        %v975 = vmul.f32 %v971, %v919
        %v976 = vmul.f32 %v971, %v921
        %v982 = vrot.slane %v972, 2
        %v983 = vrot.slane %v973, 2
        %v984 = vsel %vm459, %v982, %v983
        %v985 = vrot.slane %v974, 2
        %v986 = vsel %vm459, %v983, %v985
        %v987 = vrot.slane %v975, 2
        %v988 = vsel %vm459, %v985, %v987
        %v989 = vrot.slane %v976, 2
        %v990 = vsel %vm459, %v987, %v989
        %v995 = vadd.f32 %v963, %v984
        %v996 = vadd.f32 %v964, %v986
        %v997 = vadd.f32 %v965, %v988
        %v998 = vadd.f32 %v966, %v990
        %v999 = vld [vmem:[#allocation7 + $0x15] sm:$0x1]
        %v1000 = vlaneseq
        %v1001 = vshrl.u32 %v1000, 7
        %v1002 = vsub.s32 0, %v1001
        %v1003 = vrot.slane %v999, %v1002
        %v1004 = vmul.f32 %v1003, %v383
        %v1005 = vmul.f32 %v1003, %v384
        %v1006 = vmul.f32 %v1003, %v385
        %v1007 = vmul.f32 %v1003, %v386
        %v1008 = vadd.f32 %v995, %v1004
        %v1009 = vadd.f32 %v996, %v1005
        %v1010 = vadd.f32 %v997, %v1006
        %v1011 = vadd.f32 %v998, %v1007
        %v1012 = vld [vmem:[#allocation7 + $0x16] sm:$0x1]
        %v1013 = vlaneseq
        %v1014 = vshrl.u32 %v1013, 7
        %v1015 = vsub.s32 0, %v1014
        %v1016 = vrot.slane %v1012, %v1015
        %v1017 = vmul.f32 %v1016, %v383
        %v1018 = vmul.f32 %v1016, %v384
        %v1019 = vmul.f32 %v1016, %v385
        %v1020 = vmul.f32 %v1016, %v386
        %v1021 = vmul.f32 %v1016, %v387
        %v1027 = vrot.slane %v1017, 1
        %v1028 = vrot.slane %v1018, 1
        %v1029 = vsel %vm426, %v1027, %v1028
        %v1030 = vrot.slane %v1019, 1
        %v1031 = vsel %vm426, %v1028, %v1030
        %v1032 = vrot.slane %v1020, 1
        %v1033 = vsel %vm426, %v1030, %v1032
        %v1034 = vrot.slane %v1021, 1
        %v1035 = vsel %vm426, %v1032, %v1034
        %v1040 = vadd.f32 %v1008, %v1029
        %v1041 = vadd.f32 %v1009, %v1031
        %v1042 = vadd.f32 %v1010, %v1033
        %v1043 = vadd.f32 %v1011, %v1035
        %v1044 = vld [vmem:[#allocation7 + $0x17] sm:$0x1]
        %v1045 = vlaneseq
        %v1046 = vshrl.u32 %v1045, 7
        %v1047 = vsub.s32 0, %v1046
        %v1048 = vrot.slane %v1044, %v1047
        %v1049 = vmul.f32 %v1048, %v383
        %v1050 = vmul.f32 %v1048, %v384
        %v1051 = vmul.f32 %v1048, %v385
        %v1052 = vmul.f32 %v1048, %v386
        %v1053 = vmul.f32 %v1048, %v387
        %v1059 = vrot.slane %v1049, 2
        %v1060 = vrot.slane %v1050, 2
        %v1061 = vsel %vm459, %v1059, %v1060
        %v1062 = vrot.slane %v1051, 2
        %v1063 = vsel %vm459, %v1060, %v1062
        %v1064 = vrot.slane %v1052, 2
        %v1065 = vsel %vm459, %v1062, %v1064
        %v1066 = vrot.slane %v1053, 2
        %v1067 = vsel %vm459, %v1064, %v1066
        %v1072 = vadd.f32 %v1040, %v1061
        %v1073 = vadd.f32 %v1041, %v1063
        %v1074 = vadd.f32 %v1042, %v1065
        %v1075 = vadd.f32 %v1043, %v1067
        %1076 = vrot.lane.b32.xlu0 %v383, 127
        %v1077 = vpop.permute.xlu0 %1076
        %1078 = vrot.lane.b32.xlu0 %v384, 127
        %v1079 = vpop.permute.xlu0 %1078
        %1080 = vrot.lane.b32.xlu0 %v385, 127
        %v1081 = vpop.permute.xlu0 %1080
        %1082 = vrot.lane.b32.xlu0 %v386, 127
        %v1083 = vpop.permute.xlu0 %1082
        %1084 = vrot.lane.b32.xlu0 %v387, 127
        %v1085 = vpop.permute.xlu0 %1084
        %v1086 = vld [vmem:[#allocation7 + $0x18] sm:$0x1]
        %v1087 = vlaneseq
        %v1088 = vshrl.u32 %v1087, 7
        %v1089 = vsub.s32 0, %v1088
        %v1090 = vrot.slane %v1086, %v1089
        %v1091 = vmul.f32 %v1090, %v1077
        %v1092 = vmul.f32 %v1090, %v1079
        %v1093 = vmul.f32 %v1090, %v1081
        %v1094 = vmul.f32 %v1090, %v1083
        %v1095 = vadd.f32 %v1072, %v1091
        %v1096 = vadd.f32 %v1073, %v1092
        %v1097 = vadd.f32 %v1074, %v1093
        %v1098 = vadd.f32 %v1075, %v1094
        %v1099 = vld [vmem:[#allocation7 + $0x19] sm:$0x1]
        %v1100 = vlaneseq
        %v1101 = vshrl.u32 %v1100, 7
        %v1102 = vsub.s32 0, %v1101
        %v1103 = vrot.slane %v1099, %v1102
        %v1104 = vmul.f32 %v1103, %v1077
        %v1105 = vmul.f32 %v1103, %v1079
        %v1106 = vmul.f32 %v1103, %v1081
        %v1107 = vmul.f32 %v1103, %v1083
        %v1108 = vmul.f32 %v1103, %v1085
        %v1114 = vrot.slane %v1104, 1
        %v1115 = vrot.slane %v1105, 1
        %v1116 = vsel %vm426, %v1114, %v1115
        %v1117 = vrot.slane %v1106, 1
        %v1118 = vsel %vm426, %v1115, %v1117
        %v1119 = vrot.slane %v1107, 1
        %v1120 = vsel %vm426, %v1117, %v1119
        %v1121 = vrot.slane %v1108, 1
        %v1122 = vsel %vm426, %v1119, %v1121
        %v1127 = vadd.f32 %v1095, %v1116
        %v1128 = vadd.f32 %v1096, %v1118
        %v1129 = vadd.f32 %v1097, %v1120
        %v1130 = vadd.f32 %v1098, %v1122
        %v1131 = vld [vmem:[#allocation7 + $0x1a] sm:$0x1]
        %v1132 = vlaneseq
        %v1133 = vshrl.u32 %v1132, 7
        %v1134 = vsub.s32 0, %v1133
        %v1135 = vrot.slane %v1131, %v1134
        %v1136 = vmul.f32 %v1135, %v1077
        %v1137 = vmul.f32 %v1135, %v1079
        %v1138 = vmul.f32 %v1135, %v1081
        %v1139 = vmul.f32 %v1135, %v1083
        %v1140 = vmul.f32 %v1135, %v1085
        %v1146 = vrot.slane %v1136, 2
        %v1147 = vrot.slane %v1137, 2
        %v1148 = vsel %vm459, %v1146, %v1147
        %v1149 = vrot.slane %v1138, 2
        %v1150 = vsel %vm459, %v1147, %v1149
        %v1151 = vrot.slane %v1139, 2
        %v1152 = vsel %vm459, %v1149, %v1151
        %v1153 = vrot.slane %v1140, 2
        %v1154 = vsel %vm459, %v1151, %v1153
        %v1159 = vadd.f32 %v1127, %v1148
        %v1160 = vadd.f32 %v1128, %v1150
        %v1161 = vadd.f32 %v1129, %v1152
        %v1162 = vadd.f32 %v1130, %v1154
        %1163 = vrot.lane.b32.xlu0 %v383, 126
        %v1164 = vpop.permute.xlu0 %1163
        %1165 = vrot.lane.b32.xlu0 %v384, 126
        %v1166 = vpop.permute.xlu0 %1165
        %1167 = vrot.lane.b32.xlu0 %v385, 126
        %v1168 = vpop.permute.xlu0 %1167
        %1169 = vrot.lane.b32.xlu0 %v386, 126
        %v1170 = vpop.permute.xlu0 %1169
        %1171 = vrot.lane.b32.xlu0 %v387, 126
        %v1172 = vpop.permute.xlu0 %1171
        %v1173 = vld [vmem:[#allocation7 + $0x1b] sm:$0x1]
        %v1174 = vlaneseq
        %v1175 = vshrl.u32 %v1174, 7
        %v1176 = vsub.s32 0, %v1175
        %v1177 = vrot.slane %v1173, %v1176
        %v1178 = vmul.f32 %v1177, %v1164
        %v1179 = vmul.f32 %v1177, %v1166
        %v1180 = vmul.f32 %v1177, %v1168
        %v1181 = vmul.f32 %v1177, %v1170
        %v1182 = vadd.f32 %v1159, %v1178
        %v1183 = vadd.f32 %v1160, %v1179
        %v1184 = vadd.f32 %v1161, %v1180
        %v1185 = vadd.f32 %v1162, %v1181
        %v1186 = vld [vmem:[#allocation7 + $0x1c] sm:$0x1]
        %v1187 = vlaneseq
        %v1188 = vshrl.u32 %v1187, 7
        %v1189 = vsub.s32 0, %v1188
        %v1190 = vrot.slane %v1186, %v1189
        %v1191 = vmul.f32 %v1190, %v1164
        %v1192 = vmul.f32 %v1190, %v1166
        %v1193 = vmul.f32 %v1190, %v1168
        %v1194 = vmul.f32 %v1190, %v1170
        %v1195 = vmul.f32 %v1190, %v1172
        %v1201 = vrot.slane %v1191, 1
        %v1202 = vrot.slane %v1192, 1
        %v1203 = vsel %vm426, %v1201, %v1202
        %v1204 = vrot.slane %v1193, 1
        %v1205 = vsel %vm426, %v1202, %v1204
        %v1206 = vrot.slane %v1194, 1
        %v1207 = vsel %vm426, %v1204, %v1206
        %v1208 = vrot.slane %v1195, 1
        %v1209 = vsel %vm426, %v1206, %v1208
        %v1214 = vadd.f32 %v1182, %v1203
        %v1215 = vadd.f32 %v1183, %v1205
        %v1216 = vadd.f32 %v1184, %v1207
        %v1217 = vadd.f32 %v1185, %v1209
        %v1218 = vld [vmem:[#allocation7 + $0x1d] sm:$0x1]
        %v1219 = vlaneseq
        %v1220 = vshrl.u32 %v1219, 7
        %v1221 = vsub.s32 0, %v1220
        %v1222 = vrot.slane %v1218, %v1221
        %v1223 = vmul.f32 %v1222, %v1164
        %v1224 = vmul.f32 %v1222, %v1166
        %v1225 = vmul.f32 %v1222, %v1168
        %v1226 = vmul.f32 %v1222, %v1170
        %v1227 = vmul.f32 %v1222, %v1172
        %v1233 = vrot.slane %v1223, 2
        %v1234 = vrot.slane %v1224, 2
        %v1235 = vsel %vm459, %v1233, %v1234
        %v1236 = vrot.slane %v1225, 2
        %v1237 = vsel %vm459, %v1234, %v1236
        %v1238 = vrot.slane %v1226, 2
        %v1239 = vsel %vm459, %v1236, %v1238
        %v1240 = vrot.slane %v1227, 2
        %v1241 = vsel %vm459, %v1238, %v1240
        %v1246 = vadd.f32 %v1214, %v1235
        %v1247 = vadd.f32 %v1215, %v1237
        %v1248 = vadd.f32 %v1216, %v1239
        %v1249 = vadd.f32 %v1217, %v1241
        %1250 = vrot.lane.b32.xlu0 %v383, 125
        %v1251 = vpop.permute.xlu0 %1250
        %1252 = vrot.lane.b32.xlu0 %v384, 125
        %v1253 = vpop.permute.xlu0 %1252
        %1254 = vrot.lane.b32.xlu0 %v385, 125
        %v1255 = vpop.permute.xlu0 %1254
        %1256 = vrot.lane.b32.xlu0 %v386, 125
        %v1257 = vpop.permute.xlu0 %1256
        %1258 = vrot.lane.b32.xlu0 %v387, 125
        %v1259 = vpop.permute.xlu0 %1258
        %v1260 = vld [vmem:[#allocation7 + $0x1e] sm:$0x1]
        %v1261 = vlaneseq
        %v1262 = vshrl.u32 %v1261, 7
        %v1263 = vsub.s32 0, %v1262
        %v1264 = vrot.slane %v1260, %v1263
        %v1265 = vmul.f32 %v1264, %v1251
        %v1266 = vmul.f32 %v1264, %v1253
        %v1267 = vmul.f32 %v1264, %v1255
        %v1268 = vmul.f32 %v1264, %v1257
        %v1269 = vadd.f32 %v1246, %v1265
        %v1270 = vadd.f32 %v1247, %v1266
        %v1271 = vadd.f32 %v1248, %v1267
        %v1272 = vadd.f32 %v1249, %v1268
        %v1273 = vld [vmem:[#allocation7 + $0x1f] sm:$0x1]
        %v1274 = vlaneseq
        %v1275 = vshrl.u32 %v1274, 7
        %v1276 = vsub.s32 0, %v1275
        %v1277 = vrot.slane %v1273, %v1276
        %v1278 = vmul.f32 %v1277, %v1251
        %v1279 = vmul.f32 %v1277, %v1253
        %v1280 = vmul.f32 %v1277, %v1255
        %v1281 = vmul.f32 %v1277, %v1257
        %v1282 = vmul.f32 %v1277, %v1259
        %v1288 = vrot.slane %v1278, 1
        %v1289 = vrot.slane %v1279, 1
        %v1290 = vsel %vm426, %v1288, %v1289
        %v1291 = vrot.slane %v1280, 1
        %v1292 = vsel %vm426, %v1289, %v1291
        %v1293 = vrot.slane %v1281, 1
        %v1294 = vsel %vm426, %v1291, %v1293
        %v1295 = vrot.slane %v1282, 1
        %v1296 = vsel %vm426, %v1293, %v1295
        %v1301 = vadd.f32 %v1269, %v1290
        %v1302 = vadd.f32 %v1270, %v1292
        %v1303 = vadd.f32 %v1271, %v1294
        %v1304 = vadd.f32 %v1272, %v1296
        %v1305 = vld [vmem:[#allocation7 + $0x20] sm:$0x1]
        %v1306 = vlaneseq
        %v1307 = vshrl.u32 %v1306, 7
        %v1308 = vsub.s32 0, %v1307
        %v1309 = vrot.slane %v1305, %v1308
        %v1310 = vmul.f32 %v1309, %v1251
        %v1311 = vmul.f32 %v1309, %v1253
        %v1312 = vmul.f32 %v1309, %v1255
        %v1313 = vmul.f32 %v1309, %v1257
        %v1314 = vmul.f32 %v1309, %v1259
        %v1320 = vrot.slane %v1310, 2
        %v1321 = vrot.slane %v1311, 2
        %v1322 = vsel %vm459, %v1320, %v1321
        %v1323 = vrot.slane %v1312, 2
        %v1324 = vsel %vm459, %v1321, %v1323
        %v1325 = vrot.slane %v1313, 2
        %v1326 = vsel %vm459, %v1323, %v1325
        %v1327 = vrot.slane %v1314, 2
        %v1328 = vsel %vm459, %v1325, %v1327
        %v1333 = vadd.f32 %v1301, %v1322
        %v1334 = vadd.f32 %v1302, %v1324
        %v1335 = vadd.f32 %v1303, %v1326
        %v1336 = vadd.f32 %v1304, %v1328
        %1337 = vrot.lane.b32.xlu0 %v383, 124
        %v1338 = vpop.permute.xlu0 %1337
        %1339 = vrot.lane.b32.xlu0 %v384, 124
        %v1340 = vpop.permute.xlu0 %1339
        %1341 = vrot.lane.b32.xlu0 %v385, 124
        %v1342 = vpop.permute.xlu0 %1341
        %1343 = vrot.lane.b32.xlu0 %v386, 124
        %v1344 = vpop.permute.xlu0 %1343
        %1345 = vrot.lane.b32.xlu0 %v387, 124
        %v1346 = vpop.permute.xlu0 %1345
        %v1347 = vld [vmem:[#allocation7 + $0x21] sm:$0x1]
        %v1348 = vlaneseq
        %v1349 = vshrl.u32 %v1348, 7
        %v1350 = vsub.s32 0, %v1349
        %v1351 = vrot.slane %v1347, %v1350
        %v1352 = vmul.f32 %v1351, %v1338
        %v1353 = vmul.f32 %v1351, %v1340
        %v1354 = vmul.f32 %v1351, %v1342
        %v1355 = vmul.f32 %v1351, %v1344
        %v1356 = vadd.f32 %v1333, %v1352
        %v1357 = vadd.f32 %v1334, %v1353
        %v1358 = vadd.f32 %v1335, %v1354
        %v1359 = vadd.f32 %v1336, %v1355
        %v1360 = vld [vmem:[#allocation7 + $0x22] sm:$0x1]
        %v1361 = vlaneseq
        %v1362 = vshrl.u32 %v1361, 7
        %v1363 = vsub.s32 0, %v1362
        %v1364 = vrot.slane %v1360, %v1363
        %v1365 = vmul.f32 %v1364, %v1338
        %v1366 = vmul.f32 %v1364, %v1340
        %v1367 = vmul.f32 %v1364, %v1342
        %v1368 = vmul.f32 %v1364, %v1344
        %v1369 = vmul.f32 %v1364, %v1346
        %v1375 = vrot.slane %v1365, 1
        %v1376 = vrot.slane %v1366, 1
        %v1377 = vsel %vm426, %v1375, %v1376
        %v1378 = vrot.slane %v1367, 1
        %v1379 = vsel %vm426, %v1376, %v1378
        %v1380 = vrot.slane %v1368, 1
        %v1381 = vsel %vm426, %v1378, %v1380
        %v1382 = vrot.slane %v1369, 1
        %v1383 = vsel %vm426, %v1380, %v1382
        %v1388 = vadd.f32 %v1356, %v1377
        %v1389 = vadd.f32 %v1357, %v1379
        %v1390 = vadd.f32 %v1358, %v1381
        %v1391 = vadd.f32 %v1359, %v1383
        %v1392 = vld [vmem:[#allocation7 + $0x23] sm:$0x1]
        %v1393 = vlaneseq
        %v1394 = vshrl.u32 %v1393, 7
        %v1395 = vsub.s32 0, %v1394
        %v1396 = vrot.slane %v1392, %v1395
        %v1397 = vmul.f32 %v1396, %v1338
        %v1398 = vmul.f32 %v1396, %v1340
        %v1399 = vmul.f32 %v1396, %v1342
        %v1400 = vmul.f32 %v1396, %v1344
        %v1401 = vmul.f32 %v1396, %v1346
        %v1407 = vrot.slane %v1397, 2
        %v1408 = vrot.slane %v1398, 2
        %v1409 = vsel %vm459, %v1407, %v1408
        %v1410 = vrot.slane %v1399, 2
        %v1411 = vsel %vm459, %v1408, %v1410
        %v1412 = vrot.slane %v1400, 2
        %v1413 = vsel %vm459, %v1410, %v1412
        %v1414 = vrot.slane %v1401, 2
        %v1415 = vsel %vm459, %v1412, %v1414
        %v1420 = vadd.f32 %v1388, %v1409
        %v1421 = vadd.f32 %v1389, %v1411
        %v1422 = vadd.f32 %v1390, %v1413
        %v1423 = vadd.f32 %v1391, %v1415
        %1424 = vrot.lane.b32.xlu0 %v383, 123
        %v1425 = vpop.permute.xlu0 %1424
        %1426 = vrot.lane.b32.xlu0 %v384, 123
        %v1427 = vpop.permute.xlu0 %1426
        %1428 = vrot.lane.b32.xlu0 %v385, 123
        %v1429 = vpop.permute.xlu0 %1428
        %1430 = vrot.lane.b32.xlu0 %v386, 123
        %v1431 = vpop.permute.xlu0 %1430
        %1432 = vrot.lane.b32.xlu0 %v387, 123
        %v1433 = vpop.permute.xlu0 %1432
        %v1434 = vld [vmem:[#allocation7 + $0x24] sm:$0x1]
        %v1435 = vlaneseq
        %v1436 = vshrl.u32 %v1435, 7
        %v1437 = vsub.s32 0, %v1436
        %v1438 = vrot.slane %v1434, %v1437
        %v1439 = vmul.f32 %v1438, %v1425
        %v1440 = vmul.f32 %v1438, %v1427
        %v1441 = vmul.f32 %v1438, %v1429
        %v1442 = vmul.f32 %v1438, %v1431
        %v1443 = vadd.f32 %v1420, %v1439
        %v1444 = vadd.f32 %v1421, %v1440
        %v1445 = vadd.f32 %v1422, %v1441
        %v1446 = vadd.f32 %v1423, %v1442
        %v1447 = vld [vmem:[#allocation7 + $0x25] sm:$0x1]
        %v1448 = vlaneseq
        %v1449 = vshrl.u32 %v1448, 7
        %v1450 = vsub.s32 0, %v1449
        %v1451 = vrot.slane %v1447, %v1450
        %v1452 = vmul.f32 %v1451, %v1425
        %v1453 = vmul.f32 %v1451, %v1427
        %v1454 = vmul.f32 %v1451, %v1429
        %v1455 = vmul.f32 %v1451, %v1431
        %v1456 = vmul.f32 %v1451, %v1433
        %v1462 = vrot.slane %v1452, 1
        %v1463 = vrot.slane %v1453, 1
        %v1464 = vsel %vm426, %v1462, %v1463
        %v1465 = vrot.slane %v1454, 1
        %v1466 = vsel %vm426, %v1463, %v1465
        %v1467 = vrot.slane %v1455, 1
        %v1468 = vsel %vm426, %v1465, %v1467
        %v1469 = vrot.slane %v1456, 1
        %v1470 = vsel %vm426, %v1467, %v1469
        %v1475 = vadd.f32 %v1443, %v1464
        %v1476 = vadd.f32 %v1444, %v1466
        %v1477 = vadd.f32 %v1445, %v1468
        %v1478 = vadd.f32 %v1446, %v1470
        %v1479 = vld [vmem:[#allocation7 + $0x26] sm:$0x1]
        %v1480 = vlaneseq
        %v1481 = vshrl.u32 %v1480, 7
        %v1482 = vsub.s32 0, %v1481
        %v1483 = vrot.slane %v1479, %v1482
        %v1484 = vmul.f32 %v1483, %v1425
        %v1485 = vmul.f32 %v1483, %v1427
        %v1486 = vmul.f32 %v1483, %v1429
        %v1487 = vmul.f32 %v1483, %v1431
        %v1488 = vmul.f32 %v1483, %v1433
        %v1494 = vrot.slane %v1484, 2
        %v1495 = vrot.slane %v1485, 2
        %v1496 = vsel %vm459, %v1494, %v1495
        %v1497 = vrot.slane %v1486, 2
        %v1498 = vsel %vm459, %v1495, %v1497
        %v1499 = vrot.slane %v1487, 2
        %v1500 = vsel %vm459, %v1497, %v1499
        %v1501 = vrot.slane %v1488, 2
        %v1502 = vsel %vm459, %v1499, %v1501
        %v1507 = vadd.f32 %v1475, %v1496
        %v1508 = vadd.f32 %v1476, %v1498
        %v1509 = vadd.f32 %v1477, %v1500
        %v1510 = vadd.f32 %v1478, %v1502
        %1511 = vrot.lane.b32.xlu0 %v383, 122
        %v1512 = vpop.permute.xlu0 %1511
        %1513 = vrot.lane.b32.xlu0 %v384, 122
        %v1514 = vpop.permute.xlu0 %1513
        %1515 = vrot.lane.b32.xlu0 %v385, 122
        %v1516 = vpop.permute.xlu0 %1515
        %1517 = vrot.lane.b32.xlu0 %v386, 122
        %v1518 = vpop.permute.xlu0 %1517
        %1519 = vrot.lane.b32.xlu0 %v387, 122
        %v1520 = vpop.permute.xlu0 %1519
        %v1521 = vld [vmem:[#allocation7 + $0x27] sm:$0x1]
        %v1522 = vlaneseq
        %v1523 = vshrl.u32 %v1522, 7
        %v1524 = vsub.s32 0, %v1523
        %v1525 = vrot.slane %v1521, %v1524
        %v1526 = vmul.f32 %v1525, %v1512
        %v1527 = vmul.f32 %v1525, %v1514
        %v1528 = vmul.f32 %v1525, %v1516
        %v1529 = vmul.f32 %v1525, %v1518
        %v1530 = vadd.f32 %v1507, %v1526
        %v1531 = vadd.f32 %v1508, %v1527
        %v1532 = vadd.f32 %v1509, %v1528
        %v1533 = vadd.f32 %v1510, %v1529
        %v1534 = vld [vmem:[#allocation7 + $0x28] sm:$0x1]
        %v1535 = vlaneseq
        %v1536 = vshrl.u32 %v1535, 7
        %v1537 = vsub.s32 0, %v1536
        %v1538 = vrot.slane %v1534, %v1537
        %v1539 = vmul.f32 %v1538, %v1512
        %v1540 = vmul.f32 %v1538, %v1514
        %v1541 = vmul.f32 %v1538, %v1516
        %v1542 = vmul.f32 %v1538, %v1518
        %v1543 = vmul.f32 %v1538, %v1520
        %v1549 = vrot.slane %v1539, 1
        %v1550 = vrot.slane %v1540, 1
        %v1551 = vsel %vm426, %v1549, %v1550
        %v1552 = vrot.slane %v1541, 1
        %v1553 = vsel %vm426, %v1550, %v1552
        %v1554 = vrot.slane %v1542, 1
        %v1555 = vsel %vm426, %v1552, %v1554
        %v1556 = vrot.slane %v1543, 1
        %v1557 = vsel %vm426, %v1554, %v1556
        %v1562 = vadd.f32 %v1530, %v1551
        %v1563 = vadd.f32 %v1531, %v1553
        %v1564 = vadd.f32 %v1532, %v1555
        %v1565 = vadd.f32 %v1533, %v1557
        %v1566 = vld [vmem:[#allocation7 + $0x29] sm:$0x1]
        %v1567 = vlaneseq
        %v1568 = vshrl.u32 %v1567, 7
        %v1569 = vsub.s32 0, %v1568
        %v1570 = vrot.slane %v1566, %v1569
        %v1571 = vmul.f32 %v1570, %v1512
        %v1572 = vmul.f32 %v1570, %v1514
        %v1573 = vmul.f32 %v1570, %v1516
        %v1574 = vmul.f32 %v1570, %v1518
        %v1575 = vmul.f32 %v1570, %v1520
        %v1581 = vrot.slane %v1571, 2
        %v1582 = vrot.slane %v1572, 2
        %v1583 = vsel %vm459, %v1581, %v1582
        %v1584 = vrot.slane %v1573, 2
        %v1585 = vsel %vm459, %v1582, %v1584
        %v1586 = vrot.slane %v1574, 2
        %v1587 = vsel %vm459, %v1584, %v1586
        %v1588 = vrot.slane %v1575, 2
        %v1589 = vsel %vm459, %v1586, %v1588
        %v1594 = vadd.f32 %v1562, %v1583
        %v1595 = vadd.f32 %v1563, %v1585
        %v1596 = vadd.f32 %v1564, %v1587
        %v1597 = vadd.f32 %v1565, %v1589
        %1598 = vrot.lane.b32.xlu0 %v383, 121
        %v1599 = vpop.permute.xlu0 %1598
        %1600 = vrot.lane.b32.xlu0 %v384, 121
        %v1601 = vpop.permute.xlu0 %1600
        %1602 = vrot.lane.b32.xlu0 %v385, 121
        %v1603 = vpop.permute.xlu0 %1602
        %1604 = vrot.lane.b32.xlu0 %v386, 121
        %v1605 = vpop.permute.xlu0 %1604
        %1606 = vrot.lane.b32.xlu0 %v387, 121
        %v1607 = vpop.permute.xlu0 %1606
        %v1608 = vld [vmem:[#allocation7 + $0x2a] sm:$0x1]
        %v1609 = vlaneseq
        %v1610 = vshrl.u32 %v1609, 7
        %v1611 = vsub.s32 0, %v1610
        %v1612 = vrot.slane %v1608, %v1611
        %v1613 = vmul.f32 %v1612, %v1599
        %v1614 = vmul.f32 %v1612, %v1601
        %v1615 = vmul.f32 %v1612, %v1603
        %v1616 = vmul.f32 %v1612, %v1605
        %v1617 = vadd.f32 %v1594, %v1613
        %v1618 = vadd.f32 %v1595, %v1614
        %v1619 = vadd.f32 %v1596, %v1615
        %v1620 = vadd.f32 %v1597, %v1616
        %v1621 = vld [vmem:[#allocation7 + $0x2b] sm:$0x1]
        %v1622 = vlaneseq
        %v1623 = vshrl.u32 %v1622, 7
        %v1624 = vsub.s32 0, %v1623
        %v1625 = vrot.slane %v1621, %v1624
        %v1626 = vmul.f32 %v1625, %v1599
        %v1627 = vmul.f32 %v1625, %v1601
        %v1628 = vmul.f32 %v1625, %v1603
        %v1629 = vmul.f32 %v1625, %v1605
        %v1630 = vmul.f32 %v1625, %v1607
        %v1636 = vrot.slane %v1626, 1
        %v1637 = vrot.slane %v1627, 1
        %v1638 = vsel %vm426, %v1636, %v1637
        %v1639 = vrot.slane %v1628, 1
        %v1640 = vsel %vm426, %v1637, %v1639
        %v1641 = vrot.slane %v1629, 1
        %v1642 = vsel %vm426, %v1639, %v1641
        %v1643 = vrot.slane %v1630, 1
        %v1644 = vsel %vm426, %v1641, %v1643
        %v1649 = vadd.f32 %v1617, %v1638
        %v1650 = vadd.f32 %v1618, %v1640
        %v1651 = vadd.f32 %v1619, %v1642
        %v1652 = vadd.f32 %v1620, %v1644
        %v1653 = vld [vmem:[#allocation7 + $0x2c] sm:$0x1]
        %v1654 = vlaneseq
        %v1655 = vshrl.u32 %v1654, 7
        %v1656 = vsub.s32 0, %v1655
        %v1657 = vrot.slane %v1653, %v1656
        %v1658 = vmul.f32 %v1657, %v1599
        %v1659 = vmul.f32 %v1657, %v1601
        %v1660 = vmul.f32 %v1657, %v1603
        %v1661 = vmul.f32 %v1657, %v1605
        %v1662 = vmul.f32 %v1657, %v1607
        %v1668 = vrot.slane %v1658, 2
        %v1669 = vrot.slane %v1659, 2
        %v1670 = vsel %vm459, %v1668, %v1669
        %v1671 = vrot.slane %v1660, 2
        %v1672 = vsel %vm459, %v1669, %v1671
        %v1673 = vrot.slane %v1661, 2
        %v1674 = vsel %vm459, %v1671, %v1673
        %v1675 = vrot.slane %v1662, 2
        %v1676 = vsel %vm459, %v1673, %v1675
        %v1681 = vadd.f32 %v1649, %v1670
        %v1682 = vadd.f32 %v1650, %v1672
        %v1683 = vadd.f32 %v1651, %v1674
        %v1684 = vadd.f32 %v1652, %v1676
        %v1685 = vld [vmem:[%s3] sm:$0x1]
        %v1686 = vlaneseq
        %v1687 = vshrl.u32 %v1686, 7
        %v1688 = vsub.s32 0, %v1687
        %v1689 = vrot.slane %v1685, %v1688
        %v1690 = vadd.f32 %v1681, %v1689
        %v1691 = vadd.f32 %v1682, %v1689
        %v1692 = vadd.f32 %v1683, %v1689
        %v1693 = vadd.f32 %v1684, %v1689
        %v1694 = vmax.f32 %v1690, 0.0
        %v1695 = vmax.f32 %v1691, 0.0
        %v1696 = vmax.f32 %v1692, 0.0
        %v1697 = vmax.f32 %v1693, 0.0
        %v1703 = vrot.slane %v383, 1
        %v1704 = vrot.slane %v384, 1
        %v1705 = vsel %vm426, %v1703, %v1704
        %v1706 = vrot.slane %v385, 1
        %v1707 = vsel %vm426, %v1704, %v1706
        %v1708 = vrot.slane %v386, 1
        %v1709 = vsel %vm426, %v1706, %v1708
        %v1710 = vrot.slane %v387, 1
        %v1711 = vsel %vm426, %v1708, %v1710
        %v1716 = vadd.f32 %v1694, %v1705
        %v1717 = vadd.f32 %v1695, %v1707
        %v1718 = vadd.f32 %v1696, %v1709
        %v1719 = vadd.f32 %v1697, %v1711
        %1720 = vadd.xlane.f32.xlu0 %v1716
        %v1721 = vpop.xlane.xlu0 %1720
        %1722 = vadd.xlane.f32.xlu0 %v1717
        %v1723 = vpop.xlane.xlu0 %1722
        %1724 = vadd.xlane.f32.xlu0 %v1718
        %v1725 = vpop.xlane.xlu0 %1724
        %1726 = vadd.xlane.f32.xlu0 %v1719
        %v1727 = vpop.xlane.xlu0 %1726
        %v1728 = vmul.f32 %v1721, 0.0078125
        %v1729 = vmul.f32 %v1723, 0.0078125
        %v1730 = vmul.f32 %v1725, 0.0078125
        %v1731 = vmul.f32 %v1727, 0.0078125
        %v1732 = vmul.f32 %v1716, %v1716
        %v1733 = vmul.f32 %v1717, %v1717
        %v1734 = vmul.f32 %v1718, %v1718
        %v1735 = vmul.f32 %v1719, %v1719
        %1736 = vadd.xlane.f32.xlu0 %v1732
        %v1737 = vpop.xlane.xlu0 %1736
        %1738 = vadd.xlane.f32.xlu0 %v1733
        %v1739 = vpop.xlane.xlu0 %1738
        %1740 = vadd.xlane.f32.xlu0 %v1734
        %v1741 = vpop.xlane.xlu0 %1740
        %1742 = vadd.xlane.f32.xlu0 %v1735
        %v1743 = vpop.xlane.xlu0 %1742
        %v1744 = vmul.f32 %v1737, 0.0078125
        %v1745 = vmul.f32 %v1739, 0.0078125
        %v1746 = vmul.f32 %v1741, 0.0078125
        %v1747 = vmul.f32 %v1743, 0.0078125
        %v1748 = vmul.f32 %v1728, %v1728
        %v1749 = vmul.f32 %v1729, %v1729
        %v1750 = vmul.f32 %v1730, %v1730
        %v1751 = vmul.f32 %v1731, %v1731
        %v1752 = vsub.f32 %v1744, %v1748
        %v1753 = vsub.f32 %v1745, %v1749
        %v1754 = vsub.f32 %v1746, %v1750
        %v1755 = vsub.f32 %v1747, %v1751
        %v1756 = vmax.f32 %v1752, 0.0
        %v1757 = vmax.f32 %v1753, 0.0
        %v1758 = vmax.f32 %v1754, 0.0
        %v1759 = vmax.f32 %v1755, 0.0
        %v1760 = vsub.f32 %v1716, %v1728
        %v1761 = vsub.f32 %v1717, %v1729
        %v1762 = vsub.f32 %v1718, %v1730
        %v1763 = vsub.f32 %v1719, %v1731
        %v1764 = vadd.f32 %v1756, 1e-12
        %v1765 = vadd.f32 %v1757, 1e-12
        %v1766 = vadd.f32 %v1758, 1e-12
        %v1767 = vadd.f32 %v1759, 1e-12
        %v1768 = vrsqrt.pop %v1764
        %v1769 = vrsqrt.pop %v1765
        %v1770 = vrsqrt.pop %v1766
        %v1771 = vrsqrt.pop %v1767
        %v1772 = vmul.f32 %v1760, %v1768
        %v1773 = vmul.f32 %v1761, %v1769
        %v1774 = vmul.f32 %v1762, %v1770
        %v1775 = vmul.f32 %v1763, %v1771
        %v1776 = vld [vmem:[%s3 + $0x3] sm:$0x1]
        %v1777 = vlaneseq
        %v1778 = vshrl.u32 %v1777, 7
        %v1779 = vsub.s32 0, %v1778
        %v1780 = vrot.slane %v1776, %v1779
        %v1781 = vmul.f32 %v1772, %v1780
        %v1782 = vmul.f32 %v1773, %v1780
        %v1783 = vmul.f32 %v1774, %v1780
        %v1784 = vmul.f32 %v1775, %v1780
        %v1785 = vld [vmem:[%s3 + $0x4] sm:$0x1]
        %v1786 = vlaneseq
        %v1787 = vshrl.u32 %v1786, 7
        %v1788 = vsub.s32 0, %v1787
        %v1789 = vrot.slane %v1785, %v1788
        %v1790 = vadd.f32 %v1781, %v1789
        %v1791 = vadd.f32 %v1782, %v1789
        %v1792 = vadd.f32 %v1783, %v1789
        %v1793 = vadd.f32 %v1784, %v1789
        %v1794 = vpack.c.bf16 %v1791, %v1790
        %v1795 = vpack.c.bf16 %v1793, %v1792
        %v1796 = vld [vmem:[#allocation8] sm:$0xf]
        %v1797 = vld [vmem:[#allocation8 + $0x4] sm:$0xf]
        %v1798 = vld [vmem:[#allocation8 + $0x8] sm:$0xf]
        %v1799 = vld [vmem:[#allocation8 + $0xc] sm:$0xf]
        %v1800 = vld [vmem:[#allocation8 + $0x10] sm:$0xf]
        %v1801 = vld [vmem:[#allocation8 + $0x14] sm:$0xf]
        %v1802 = vld [vmem:[#allocation8 + $0x18] sm:$0xf]
        %v1803 = vld [vmem:[#allocation8 + $0x1c] sm:$0xf]
        %v1804 = vld [vmem:[#allocation8 + $0x20] sm:$0xf]
        %v1805 = vld [vmem:[#allocation8 + $0x24] sm:$0xf]
        %v1806 = vld [vmem:[#allocation8 + $0x28] sm:$0xf]
        %v1807 = vld [vmem:[#allocation8 + $0x2c] sm:$0xf]
        %v1808 = vld [vmem:[#allocation8 + $0x30] sm:$0xf]
        %v1809 = vld [vmem:[#allocation8 + $0x34] sm:$0xf]
        %v1810 = vld [vmem:[#allocation8 + $0x38] sm:$0xf]
        %v1811 = vld [vmem:[#allocation8 + $0x3c] sm:$0xf]
        %v1812 = vld [vmem:[%s3 + $0x1] sm:$0x1]
        %v1813 = vlaneseq
        %v1814 = vshrl.u32 %v1813, 7
        %v1815 = vsub.s32 0, %v1814
        %v1816 = vrot.slane %v1812, %v1815
        %v1833 = vunpack.c.l.b16 %v1796
        %v1834 = vunpack.c.l.b16 %v1797
        %v1835 = vunpack.c.l.b16 %v1798
        %v1836 = vunpack.c.l.b16 %v1799
        %v1837 = vunpack.c.l.b16 %v1800
        %v1838 = vunpack.c.l.b16 %v1801
        %v1839 = vunpack.c.l.b16 %v1802
        %v1840 = vunpack.c.l.b16 %v1803
        %v1841 = vunpack.c.l.b16 %v1804
        %v1842 = vunpack.c.l.b16 %v1805
        %v1843 = vunpack.c.l.b16 %v1806
        %v1844 = vunpack.c.l.b16 %v1807
        %v1845 = vunpack.c.l.b16 %v1808
        %v1846 = vunpack.c.l.b16 %v1809
        %v1847 = vunpack.c.l.b16 %v1810
        %v1848 = vunpack.c.l.b16 %v1811
        %v1849 = vpack.c.b16 %v1834, %v1833
        %v1850 = vpack.c.b16 %v1836, %v1835
        %v1851 = vpack.c.b16 %v1838, %v1837
        %v1852 = vpack.c.b16 %v1840, %v1839
        %v1853 = vpack.c.b16 %v1842, %v1841
        %v1854 = vpack.c.b16 %v1844, %v1843
        %v1855 = vpack.c.b16 %v1846, %v1845
        %v1856 = vpack.c.b16 %v1848, %v1847
        %1865 = vmatprep.subr.bf16.mxu0 0
        %1866 = vmatpush1.bf16.msra.mxu0 %v1849
        %1867 = vmatprep.subr.bf16.mxu0 0
        %1868 = vmatpush1.bf16.msra.mxu0 %v1850
        %1869 = vmatprep.subr.bf16.mxu0 0
        %1870 = vmatpush1.bf16.msra.mxu0 %v1851
        %1871 = vmatprep.subr.bf16.mxu0 0
        %1872 = vmatpush1.bf16.msra.mxu0 %v1852
        %1873 = vmatprep.subr.bf16.mxu0 0
        %1874 = vmatpush1.bf16.msra.mxu0 %v1853
        %1875 = vmatprep.subr.bf16.mxu0 0
        %1876 = vmatpush1.bf16.msra.mxu0 %v1854
        %1877 = vmatprep.subr.bf16.mxu0 0
        %1878 = vmatpush1.bf16.msra.mxu0 %v1855
        %1879 = vmatprep.subr.bf16.mxu0 0
        %1880 = vmatpush1.bf16.msra.mxu0 %v1856
        %1881 = vmatprep.subr.bf16.mxu0 0
        %1882 = vmatpush1.bf16.msra.mxu0 0
        %1883 = vmatprep.subr.bf16.mxu0 0
        %1884 = vmatpush1.bf16.msra.mxu0 0
        %1885 = vmatprep.subr.bf16.mxu0 0
        %1886 = vmatpush1.bf16.msra.mxu0 0
        %1887 = vmatprep.subr.bf16.mxu0 0
        %1888 = vmatpush1.bf16.msra.mxu0 0
        %1889 = vmatprep.subr.bf16.mxu0 0
        %1890 = vmatpush1.bf16.msra.mxu0 0
        %1891 = vmatprep.subr.bf16.mxu0 0
        %1892 = vmatpush1.bf16.msra.mxu0 0
        %1893 = vmatprep.subr.bf16.mxu0 0
        %1894 = vmatpush1.bf16.msra.mxu0 0
        %1895 = vmatprep.subr.bf16.mxu0 0
        %1896 = vmatpush1.bf16.msra.mxu0 0
        %1897 = vmatprep.mubr.bf16.mxu0 0
        %1898 = vmatmul.mubr.bf16.gmra.mrb[0].mxu0 %v1794
        %v1899 = vpop.f32.mrb[0].mxu0
        %v1900 = vadd.f32 %v1816, %v1899
        %v1901 = vpop.f32.mrb[0].mxu0
        %v1902 = vpop.f32.mrb[0].mxu0
        %v1903 = vadd.f32 %v1816, %v1902
        %v1904 = vpop.f32.mrb[0].mxu0
        %1905 = vmatprep.mubr.bf16.mxu0 0
        %1906 = vmatmul.mubr.bf16.gmra.mrb[0].mxu0 %v1795
        %v1907 = vpop.f32.mrb[0].mxu0
        %v1908 = vadd.f32 %v1816, %v1907
        %v1909 = vpop.f32.mrb[0].mxu0
        %v1910 = vpop.f32.mrb[0].mxu0
        %v1911 = vadd.f32 %v1816, %v1910
        %v1912 = vpop.f32.mrb[0].mxu0
        %1913 = vdwg.mxu0
        %v1914 = vmax.f32 %v1900, 0.0
        %v1915 = vmax.f32 %v1903, 0.0
        %v1916 = vmax.f32 %v1908, 0.0
        %v1917 = vmax.f32 %v1911, 0.0
        %v1918 = vpack.c.bf16 %v1915, %v1914
        %v1919 = vpack.c.bf16 %v1917, %v1916
        %v1920 = vld [vmem:[#allocation10] sm:$0xf]
        %v1921 = vld [vmem:[#allocation10 + $0x4] sm:$0xf]
        %v1922 = vld [vmem:[#allocation10 + $0x8] sm:$0xf]
        %v1923 = vld [vmem:[#allocation10 + $0xc] sm:$0xf]
        %v1924 = vld [vmem:[#allocation10 + $0x10] sm:$0xf]
        %v1925 = vld [vmem:[#allocation10 + $0x14] sm:$0xf]
        %v1926 = vld [vmem:[#allocation10 + $0x18] sm:$0xf]
        %v1927 = vld [vmem:[#allocation10 + $0x1c] sm:$0xf]
        %v1928 = vld [vmem:[#allocation10 + $0x20] sm:$0xf]
        %v1929 = vld [vmem:[#allocation10 + $0x24] sm:$0xf]
        %v1930 = vld [vmem:[#allocation10 + $0x28] sm:$0xf]
        %v1931 = vld [vmem:[#allocation10 + $0x2c] sm:$0xf]
        %v1932 = vld [vmem:[#allocation10 + $0x30] sm:$0xf]
        %v1933 = vld [vmem:[#allocation10 + $0x34] sm:$0xf]
        %v1934 = vld [vmem:[#allocation10 + $0x38] sm:$0xf]
        %v1935 = vld [vmem:[#allocation10 + $0x3c] sm:$0xf]
        %v1936 = vld [vmem:[%s3 + $0x2] sm:$0x1]
        %v1937 = vlaneseq
        %v1938 = vshrl.u32 %v1937, 7
        %v1939 = vsub.s32 0, %v1938
        %v1940 = vrot.slane %v1936, %v1939
        %v1957 = vunpack.c.l.b16 %v1920
        %v1958 = vunpack.c.l.b16 %v1921
        %v1959 = vunpack.c.l.b16 %v1922
        %v1960 = vunpack.c.l.b16 %v1923
        %v1961 = vunpack.c.l.b16 %v1924
        %v1962 = vunpack.c.l.b16 %v1925
        %v1963 = vunpack.c.l.b16 %v1926
        %v1964 = vunpack.c.l.b16 %v1927
        %v1965 = vunpack.c.l.b16 %v1928
        %v1966 = vunpack.c.l.b16 %v1929
        %v1967 = vunpack.c.l.b16 %v1930
        %v1968 = vunpack.c.l.b16 %v1931
        %v1969 = vunpack.c.l.b16 %v1932
        %v1970 = vunpack.c.l.b16 %v1933
        %v1971 = vunpack.c.l.b16 %v1934
        %v1972 = vunpack.c.l.b16 %v1935
        %v1973 = vpack.c.b16 %v1958, %v1957
        %v1974 = vpack.c.b16 %v1960, %v1959
        %v1975 = vpack.c.b16 %v1962, %v1961
        %v1976 = vpack.c.b16 %v1964, %v1963
        %v1977 = vpack.c.b16 %v1966, %v1965
        %v1978 = vpack.c.b16 %v1968, %v1967
        %v1979 = vpack.c.b16 %v1970, %v1969
        %v1980 = vpack.c.b16 %v1972, %v1971
        %1989 = vmatprep.subr.bf16.mxu0 0
        %1990 = vmatpush1.bf16.msra.mxu0 %v1973
        %1991 = vmatprep.subr.bf16.mxu0 0
        %1992 = vmatpush1.bf16.msra.mxu0 %v1974
        %1993 = vmatprep.subr.bf16.mxu0 0
        %1994 = vmatpush1.bf16.msra.mxu0 %v1975
        %1995 = vmatprep.subr.bf16.mxu0 0
        %1996 = vmatpush1.bf16.msra.mxu0 %v1976
        %1997 = vmatprep.subr.bf16.mxu0 0
        %1998 = vmatpush1.bf16.msra.mxu0 %v1977
        %1999 = vmatprep.subr.bf16.mxu0 0
        %2000 = vmatpush1.bf16.msra.mxu0 %v1978
        %2001 = vmatprep.subr.bf16.mxu0 0
        %2002 = vmatpush1.bf16.msra.mxu0 %v1979
        %2003 = vmatprep.subr.bf16.mxu0 0
        %2004 = vmatpush1.bf16.msra.mxu0 %v1980
        %2005 = vmatprep.subr.bf16.mxu0 0
        %2006 = vmatpush1.bf16.msra.mxu0 0
        %2007 = vmatprep.subr.bf16.mxu0 0
        %2008 = vmatpush1.bf16.msra.mxu0 0
        %2009 = vmatprep.subr.bf16.mxu0 0
        %2010 = vmatpush1.bf16.msra.mxu0 0
        %2011 = vmatprep.subr.bf16.mxu0 0
        %2012 = vmatpush1.bf16.msra.mxu0 0
        %2013 = vmatprep.subr.bf16.mxu0 0
        %2014 = vmatpush1.bf16.msra.mxu0 0
        %2015 = vmatprep.subr.bf16.mxu0 0
        %2016 = vmatpush1.bf16.msra.mxu0 0
        %2017 = vmatprep.subr.bf16.mxu0 0
        %2018 = vmatpush1.bf16.msra.mxu0 0
        %2019 = vmatprep.subr.bf16.mxu0 0
        %2020 = vmatpush1.bf16.msra.mxu0 0
        %2021 = vmatprep.mubr.bf16.mxu0 0
        %2022 = vmatmul.mubr.bf16.gmra.mrb[0].mxu0 %v1918
        %v2023 = vpop.f32.mrb[0].mxu0
        %v2024 = vadd.f32 %v1940, %v2023
        %v2025 = vpop.f32.mrb[0].mxu0
        %v2026 = vpop.f32.mrb[0].mxu0
        %v2027 = vadd.f32 %v1940, %v2026
        %v2028 = vpop.f32.mrb[0].mxu0
        %2029 = vmatprep.mubr.bf16.mxu0 0
        %2030 = vmatmul.mubr.bf16.gmra.mrb[0].mxu0 %v1919
        %v2031 = vpop.f32.mrb[0].mxu0
        %v2032 = vadd.f32 %v1940, %v2031
        %v2033 = vpop.f32.mrb[0].mxu0
        %v2034 = vpop.f32.mrb[0].mxu0
        %v2035 = vadd.f32 %v1940, %v2034
        %v2036 = vpop.f32.mrb[0].mxu0
        %2037 = vdwg.mxu0
        %v2038 = vadd.f32 %v2024, %v1790
        %v2039 = vadd.f32 %v2027, %v1791
        %v2040 = vadd.f32 %v2032, %v1792
        %v2041 = vadd.f32 %v2035, %v1793
        %2042 = vadd.xlane.f32.xlu0 %v2038
        %v2043 = vpop.xlane.xlu0 %2042
        %2044 = vadd.xlane.f32.xlu0 %v2039
        %v2045 = vpop.xlane.xlu0 %2044
        %2046 = vadd.xlane.f32.xlu0 %v2040
        %v2047 = vpop.xlane.xlu0 %2046
        %2048 = vadd.xlane.f32.xlu0 %v2041
        %v2049 = vpop.xlane.xlu0 %2048
        %v2050 = vmul.f32 %v2043, 0.0078125
        %v2051 = vmul.f32 %v2045, 0.0078125
        %v2052 = vmul.f32 %v2047, 0.0078125
        %v2053 = vmul.f32 %v2049, 0.0078125
        %v2054 = vmul.f32 %v2038, %v2038
        %v2055 = vmul.f32 %v2039, %v2039
        %v2056 = vmul.f32 %v2040, %v2040
        %v2057 = vmul.f32 %v2041, %v2041
        %2058 = vadd.xlane.f32.xlu0 %v2054
        %v2059 = vpop.xlane.xlu0 %2058
        %2060 = vadd.xlane.f32.xlu0 %v2055
        %v2061 = vpop.xlane.xlu0 %2060
        %2062 = vadd.xlane.f32.xlu0 %v2056
        %v2063 = vpop.xlane.xlu0 %2062
        %2064 = vadd.xlane.f32.xlu0 %v2057
        %v2065 = vpop.xlane.xlu0 %2064
        %v2066 = vmul.f32 %v2059, 0.0078125
        %v2067 = vmul.f32 %v2061, 0.0078125
        %v2068 = vmul.f32 %v2063, 0.0078125
        %v2069 = vmul.f32 %v2065, 0.0078125
        %v2070 = vmul.f32 %v2050, %v2050
        %v2071 = vmul.f32 %v2051, %v2051
        %v2072 = vmul.f32 %v2052, %v2052
        %v2073 = vmul.f32 %v2053, %v2053
        %v2074 = vsub.f32 %v2066, %v2070
        %v2075 = vsub.f32 %v2067, %v2071
        %v2076 = vsub.f32 %v2068, %v2072
        %v2077 = vsub.f32 %v2069, %v2073
        %v2078 = vmax.f32 %v2074, 0.0
        %v2079 = vmax.f32 %v2075, 0.0
        %v2080 = vmax.f32 %v2076, 0.0
        %v2081 = vmax.f32 %v2077, 0.0
        %v2082 = vsub.f32 %v2038, %v2050
        %v2083 = vsub.f32 %v2039, %v2051
        %v2084 = vsub.f32 %v2040, %v2052
        %v2085 = vsub.f32 %v2041, %v2053
        %v2086 = vadd.f32 %v2078, 1e-12
        %v2087 = vadd.f32 %v2079, 1e-12
        %v2088 = vadd.f32 %v2080, 1e-12
        %v2089 = vadd.f32 %v2081, 1e-12
        %v2090 = vrsqrt.pop %v2086
        %v2091 = vrsqrt.pop %v2087
        %v2092 = vrsqrt.pop %v2088
        %v2093 = vrsqrt.pop %v2089
        %v2094 = vmul.f32 %v2082, %v2090
        %v2095 = vmul.f32 %v2083, %v2091
        %v2096 = vmul.f32 %v2084, %v2092
        %v2097 = vmul.f32 %v2085, %v2093
        %v2098 = vld [vmem:[%s3 + $0x5] sm:$0x1]
        %v2099 = vlaneseq
        %v2100 = vshrl.u32 %v2099, 7
        %v2101 = vsub.s32 0, %v2100
        %v2102 = vrot.slane %v2098, %v2101
        %v2103 = vmul.f32 %v2094, %v2102
        %v2104 = vmul.f32 %v2095, %v2102
        %v2105 = vmul.f32 %v2096, %v2102
        %v2106 = vmul.f32 %v2097, %v2102
        %v2107 = vld [vmem:[%s3 + $0x6] sm:$0x1]
        %v2108 = vlaneseq
        %v2109 = vshrl.u32 %v2108, 7
        %v2110 = vsub.s32 0, %v2109
        %v2111 = vrot.slane %v2107, %v2110
        %v2112 = vadd.f32 %v2103, %v2111
        %v2113 = vadd.f32 %v2104, %v2111
        %v2114 = vadd.f32 %v2105, %v2111
        %v2115 = vadd.f32 %v2106, %v2111
        %2116 = vst [vmem:[%s377] sm:$0xff] %v2112
        %2117 = vst [vmem:[%s377 + $0x8] sm:$0xff] %v2113
        %2118 = vst [vmem:[%s377 + $0x10] sm:$0xff] %v2114
        %2119 = vst [vmem:[%s377 + $0x18] sm:$0xff] %v2115
        %s2120 = sand.u32 %s193, 1
        %s2121 = scalar_lea.sflag [#allocation4], %s2120
        %s2122 = sand.u32 %s193, 1
        %s2123 = smul.addr %s2122, 32
        %s2124 = scalar_lea.vmem [#allocation11], %s2123
        // Predicated region
        $region65: #{tpu_custom_call.1} parent=43 // pred_check
          %p2125 = pneg %p203
        $region66: #{tpu_custom_call.1} parent=43 // pred_check_branch
          %2127 = sbr.rel (%p2125) target = $region68
        $region67: #{tpu_custom_call.1} parent=43 // pred_region
          %s2128 = smul.u32 4, %s32
          %s2130 = ssub.s32 512, 512
          %2131 = vsyncadd %s2121, %s2130
          %s2132 = smul.addr %s31, 8
          %s2133 = sadd.s32 %s2128, %s2132
          %s2134 = smul.addr %s2133, 128
          %s2135 = scalar_lea.hbm %s6, %s2134
          %s2136 = sshll.u32 %s2124, 4
          %s2137 = int_to_ptr.vmem [resolvable:$true] %s2136
          %2142 = dma.vmem_to_hbm [thread:$0]  %s2137, 512, %s2135, %s2121, 128, 128, 8
        $region68: #{tpu_custom_call.1} parent=43 // pred_fallthru
          _
      $region44: #{tpu_custom_call.1} parent=5 // pred_fallthru
        _
      %p2143 = scmp.le.s32.totalorder 2, %s22
      // Predicated region
      $region69: #{tpu_custom_call.1} parent=5 // pred_check
        %p2144 = pneg %p2143
      $region70: #{tpu_custom_call.1} parent=5 // pred_check_branch
        %2146 = sbr.rel (%p2144) target = $region72
      $region71: #{tpu_custom_call.1} parent=5 // pred_region
        %s2147 = ssub.s32 %s22, 2
        // Predicated region
        $region73: #{tpu_custom_call.1} parent=71 // pred_check
          %p2148 = pneg %p209
        $region74: #{tpu_custom_call.1} parent=71 // pred_check_branch
          %2150 = sbr.rel (%p2148) target = $region76
        $region75: #{tpu_custom_call.1} parent=71 // pred_region
          %s2151 = sand.u32 %s194, 1
          %s2152 = scalar_lea.sflag [#allocation4], %s2151
          %s2153 = sand.u32 %s194, 1
          %s2154 = smul.addr %s2153, 32
          %s2155 = scalar_lea.vmem [#allocation11], %s2154
          %2156 = dma.done %s2152, 512
        $region76: #{tpu_custom_call.1} parent=71 // pred_fallthru
          _
      $region72: #{tpu_custom_call.1} parent=5 // pred_fallthru
        _
    $region6: #{tpu_custom_call.1} parent=1 // loop_footer
      %s26 = sadd.s32 1, %s22
    $region7: #{tpu_custom_call.1} parent=1 // loop_footer_branch
      %21 = sbr.rel target = $region3
    $region8: #{tpu_custom_call.1} parent=1 // loop_exit
      _
    %2157 = vsyncpa [#allocation3], 1
    %s2158 = scalar_lea.sflag [#allocation3], 1
    %2159 = vsyncpa %s2158, 1
    %2160 = vsyncpa [#allocation6], 1
    %s2161 = scalar_lea.sflag [#allocation6], 1
    %2162 = vsyncpa %s2161, 1
    %2163 = vsyncpa [#allocation9], 1
    %2164 = vsyncpa [#allocation4], 1
    %s2165 = scalar_lea.sflag [#allocation4], 1
    %2166 = vsyncpa %s2165, 1

</llo_original>
